<compile_context>
chip_gen: v5e
topology: v5e:2x2
jax: 0.10.0
libtpu: 0.0.40
codegen_flags: <defaults>
</compile_context>

<pallas_src>
import numpy as np
import jax
import jax.numpy as jnp
from jax.experimental import pallas as pl
from jax.experimental.pallas import tpu as pltpu

# ----------------------------- configuration (small, deterministic) ----------
B = 2            # batch size
G = 8            # latent graph nodes (num_graph_nodes)
L = 16           # lat/lon nodes (num_latlons)
F = 32           # input_dim (node feature dim)
OUT_DIM = 16     # output_dim
ED = 32          # output_edge_dim
HID = 32         # hidden dims (processor node / edge MLPs, decoder MLP)
E = 2 * L        # edges per (un-batched) decoder graph: 2 latent sources per lat/lon
N = B * (G + L)  # batched node count
EB = B * E       # batched edge count
EA_PAD = 8       # pad the 2-wide raw edge attr to 8 lanes (zero-padded weight rows)

# ----------------------------- weight-slab layout (static row offsets) --------
O_EW1 = 0
O_EW2 = O_EW1 + EA_PAD
O_EW3 = O_EW2 + HID
O_PW1S = O_EW3 + HID
O_PW1D = O_PW1S + F
O_PW1E = O_PW1D + F
O_PW2 = O_PW1E + ED
O_PW3 = O_PW2 + HID
O_NW1X = O_PW3 + HID
O_NW1A = O_NW1X + F
O_NW2 = O_NW1A + ED
O_NW3 = O_NW2 + HID
O_DW1 = O_NW3 + HID
O_DW2 = O_DW1 + F
O_DW3 = O_DW2 + HID
W_ROWS = O_DW3 + HID            # 456 (multiple of 8)

# bias/norm slab row indices
BI_EB1, BI_EB2, BI_EB3, BI_EG, BI_EBT = 0, 1, 2, 3, 4
BI_PB1, BI_PB2, BI_PB3, BI_PG, BI_PBT = 5, 6, 7, 8, 9
BI_NB1, BI_NB2, BI_NB3, BI_NG, BI_NBT = 10, 11, 12, 13, 14
BI_DB1, BI_DB2, BI_DB3 = 15, 16, 17
B_ROWS = 24                     # 18 used rows, padded to a sublane multiple


# ----------------------------- shared in-kernel math --------------------------
def _silu(x):
    # tanh-form sigmoid: EUP slot, no inf intermediates, matches jax.nn.silu closely
    return x * (0.5 * (jnp.tanh(0.5 * x) + 1.0))


def _layer_norm(y, gamma, beta):
    # E[x^2] - E[x]^2 form: the two cross-lane reductions are independent
    m1 = jnp.mean(y, axis=-1, keepdims=True)
    m2 = jnp.mean(y * y, axis=-1, keepdims=True)
    var = m2 - m1 * m1
    return (y - m1) * jax.lax.rsqrt(var + 1e-5) * gamma + beta


# ----------------------------- fused Pallas kernel ----------------------------
def fused_decoder_kernel(pf_ref, ea_ref, idx_ref, col_ref, w_ref, b_ref, o_ref, x_sc):
    f32 = jnp.float32

    def W(off, rows=HID):           # static ref slice: free
        return w_ref[off:off + rows, :]

    def Bv(i):                      # [1, 32] bias / norm row
        return b_ref[i:i + 1, :]

    # ---- 1. batched node features x = [graph nodes | zero lat/lon nodes] ---------
    # Static, sublane-aligned copies into zero-initialized VMEM scratch.
    x_sc[...] = jnp.zeros((N, F), f32)
    for b in range(B):
        x_sc[b * (G + L):b * (G + L) + G, :] = pf_ref[b * G:(b + 1) * G, :]
    x = x_sc[...]                                                  # [N, F]

    # ---- 2. edge encoder on per-batch edges, tile AFTER the pw1e matmul ----------
    ea0 = ea_ref[...]                                              # [E, EA_PAD]
    h = _silu(jnp.dot(ea0, W(O_EW1, EA_PAD), preferred_element_type=f32) + Bv(BI_EB1))
    h = _silu(jnp.dot(h, W(O_EW2), preferred_element_type=f32) + Bv(BI_EB2))
    enc = jnp.dot(h, W(O_EW3), preferred_element_type=f32) + Bv(BI_EB3)
    enc = _layer_norm(enc, Bv(BI_EG), Bv(BI_EBT))                  # [E, ED]

    enc_p = jnp.dot(enc, W(O_PW1E, ED), preferred_element_type=f32)   # [E, HID]
    e_term = jnp.concatenate([enc_p] * B, axis=0)                  # [EB, HID]
    ea = jnp.concatenate([enc] * B, axis=0)                        # [EB, ED] residual

    # ---- 3. gather x[row], x[col]: plain [2EB,N] @ [N,F] matmul ------------------
    idx = idx_ref[...]                                             # [2EB, 1] int32
    nid = jax.lax.broadcasted_iota(jnp.int32, (2 * EB, N), 1)
    sel = (nid == idx).astype(f32)                                 # [2EB, N]
    gathered = jnp.dot(sel, x, preferred_element_type=f32)         # [2EB, F]
    src = gathered[0:EB]
    dst = gathered[EB:2 * EB]

    # ---- 4. EdgeProcessor: MLP([x[row], x[col], e]) + e (split-weight 1st layer) -
    h = _silu(jnp.dot(src, W(O_PW1S, F), preferred_element_type=f32)
              + jnp.dot(dst, W(O_PW1D, F), preferred_element_type=f32)
              + e_term + Bv(BI_PB1))
    h = _silu(jnp.dot(h, W(O_PW2), preferred_element_type=f32) + Bv(BI_PB2))
    upd = jnp.dot(h, W(O_PW3), preferred_element_type=f32) + Bv(BI_PB3)
    ea_new = _layer_norm(upd, Bv(BI_PG), Bv(BI_PBT)) + ea          # [EB, ED]

    # ---- 5. NodeProcessor: MLP([x, scatter_sum(e_new, col)]) + x ------------------
    colv = col_ref[...]                                            # [1, EB] int32
    nid2 = jax.lax.broadcasted_iota(jnp.int32, (N, EB), 0)
    dst_selT = (nid2 == colv).astype(f32)                          # [N, EB]
    agg = jnp.dot(dst_selT, ea_new, preferred_element_type=f32)    # [N, ED]
    h = _silu(jnp.dot(x, W(O_NW1X, F), preferred_element_type=f32)
              + jnp.dot(agg, W(O_NW1A, ED), preferred_element_type=f32) + Bv(BI_NB1))
    h = _silu(jnp.dot(h, W(O_NW2), preferred_element_type=f32) + Bv(BI_NB2))
    upd = jnp.dot(h, W(O_NW3), preferred_element_type=f32) + Bv(BI_NB3)
    x_new = _layer_norm(upd, Bv(BI_NG), Bv(BI_NBT)) + x            # [N, F]

    # ---- 6. node decoder MLP on lat/lon rows only (sublane-aligned slices) --------
    latlon = jnp.concatenate(
        [x_new[b * (G + L) + G:(b + 1) * (G + L)] for b in range(B)], axis=0)  # [B*L, F]
    h = _silu(jnp.dot(latlon, W(O_DW1, F), preferred_element_type=f32) + Bv(BI_DB1))
    h = _silu(jnp.dot(h, W(O_DW2), preferred_element_type=f32) + Bv(BI_DB2))
    y = jnp.dot(h, W(O_DW3), preferred_element_type=f32) + Bv(BI_DB3)          # [B*L, 32]
    o_ref[...] = y[:, :OUT_DIM]


# ----------------------------- wrapper (single pallas_call, no per-call prep) --
_VMEM = pl.BlockSpec(memory_space=pltpu.MemorySpace.VMEM)


def assimilator_decoder_forward(processor_features, start_features,
                                ea_pad, idx_sd, col_ld, w_slab, b_slab):
    del start_features  # unused by the reference forward as well
    out = pl.pallas_call(
        fused_decoder_kernel,
        out_shape=jax.ShapeDtypeStruct((B * L, OUT_DIM), jnp.float32),
        in_specs=[_VMEM] * 6,
        out_specs=_VMEM,
        scratch_shapes=[pltpu.VMEM((N, F), jnp.float32)],
    )(processor_features, ea_pad, idx_sd, col_ld, w_slab, b_slab)
    return out.reshape(B, L, OUT_DIM)


# ----------------------------- one-time setup: pack slabs & static indices -----
def build_static_inputs(params, edge_attr, row, col):
    # pad the 2-wide raw edge attr to EA_PAD lanes (padded weight rows are zero)
    ea_pad = jnp.pad(edge_attr, ((0, 0), (0, EA_PAD - edge_attr.shape[1])))

    # batch the edge index exactly as torch: idx + i*max(idx) + i  (hoisted to host)
    row_np = np.asarray(row, np.int32)
    col_np = np.asarray(col, np.int32)
    max_idx = int(max(row_np.max(), col_np.max()))
    # kernel's node layout assumes per-batch blocks of G+L rows
    assert max_idx + 1 == G + L, "graph must touch node index G+L-1 for this layout"
    offs = np.arange(B, dtype=np.int32) * (max_idx + 1)
    row_b = (row_np[None, :] + offs[:, None]).reshape(-1)
    col_b = (col_np[None, :] + offs[:, None]).reshape(-1)
    idx_sd = jnp.asarray(np.concatenate([row_b, col_b])[:, None], jnp.int32)   # [2EB, 1]
    col_ld = jnp.asarray(col_b[None, :], jnp.int32)                            # [1, EB]

    # weight slab [W_ROWS, 32]: concat-input first layers split; dw3 lane-padded
    ew1 = jnp.pad(params["edge_enc"][0], ((0, EA_PAD - 2), (0, 0)))
    pw1 = params["edge_proc"][0]
    nw1 = params["node_proc"][0]
    dw3 = jnp.pad(params["decoder"][4], ((0, 0), (0, HID - OUT_DIM)))
    weights = [
        ew1, params["edge_enc"][2], params["edge_enc"][4],
        pw1[:F], pw1[F:2 * F], pw1[2 * F:],
        params["edge_proc"][2], params["edge_proc"][4],
        nw1[:F], nw1[F:],
        params["node_proc"][2], params["node_proc"][4],
        params["decoder"][0], params["decoder"][2], dw3,
    ]
    w_slab = jnp.concatenate([w.astype(jnp.float32) for w in weights], axis=0)
    assert w_slab.shape == (W_ROWS, HID), w_slab.shape

    # bias / norm slab [B_ROWS, 32]
    db3 = jnp.pad(params["decoder"][5], ((0, 0), (0, HID - OUT_DIM)))
    biases = [
        params["edge_enc"][1], params["edge_enc"][3], params["edge_enc"][5],
        params["edge_enc"][6], params["edge_enc"][7],
        params["edge_proc"][1], params["edge_proc"][3], params["edge_proc"][5],
        params["edge_proc"][6], params["edge_proc"][7],
        params["node_proc"][1], params["node_proc"][3], params["node_proc"][5],
        params["node_proc"][6], params["node_proc"][7],
        params["decoder"][1], params["decoder"][3], db3,
    ]
    b_slab = jnp.concatenate([b.astype(jnp.float32) for b in biases], axis=0)
    b_slab = jnp.pad(b_slab, ((0, B_ROWS - b_slab.shape[0]), (0, 0)))
    return ea_pad, idx_sd, col_ld, w_slab, b_slab


# ----------------------------- parameter init (deterministic) ------------------
def _init_linear(key, fan_in, fan_out):
    kw, kb = jax.random.split(key)
    bound = 1.0 / np.sqrt(fan_in)
    w = jax.random.uniform(kw, (fan_in, fan_out), jnp.float32, -bound, bound)
    b = jax.random.uniform(kb, (1, fan_out), jnp.float32, -bound, bound)
    return w, b


def _init_mlp(key, in_dim, out_dim, hidden_dim, norm):
    k1, k2, k3 = jax.random.split(key, 3)
    w1, b1 = _init_linear(k1, in_dim, hidden_dim)
    w2, b2 = _init_linear(k2, hidden_dim, hidden_dim)
    w3, b3 = _init_linear(k3, hidden_dim, out_dim)
    params = [w1, b1, w2, b2, w3, b3]
    if norm:
        params += [jnp.ones((1, out_dim), jnp.float32),
                   jnp.zeros((1, out_dim), jnp.float32)]
    return tuple(params)


# ----------------------------- pure-JAX reference ------------------------------
def reference_forward(processor_features, params, edge_attr, row, col, batch_size):
    def mlp(x, p, norm):
        w1, b1, w2, b2, w3, b3 = p[:6]
        h = jax.nn.silu(x @ w1 + b1)
        h = jax.nn.silu(h @ w2 + b2)
        y = h @ w3 + b3
        if norm:
            g, bt = p[6], p[7]
            mu = y.mean(-1, keepdims=True)
            var = ((y - mu) ** 2).mean(-1, keepdims=True)
            y = (y - mu) / jnp.sqrt(var + 1e-5) * g + bt
        return y

    ea = mlp(edge_attr, params["edge_enc"], True)
    ea = jnp.tile(ea, (batch_size, 1))
    max_idx = jnp.maximum(row.max(), col.max())
    offs = jnp.arange(batch_size, dtype=jnp.int32) * (max_idx + 1)
    row_b = (row[None, :] + offs[:, None]).reshape(-1)
    col_b = (col[None, :] + offs[:, None]).reshape(-1)
    feats = processor_features.reshape(batch_size, G, F)
    x = jnp.concatenate([feats, jnp.zeros((batch_size, L, F), jnp.float32)],
                        axis=1).reshape(-1, F)
    e_in = jnp.concatenate([x[row_b], x[col_b], ea], axis=-1)
    ea_new = mlp(e_in, params["edge_proc"], True) + ea
    agg = jax.ops.segment_sum(ea_new, col_b, num_segments=x.shape[0])
    n_in = jnp.concatenate([x, agg], axis=-1)
    x_new = mlp(n_in, params["node_proc"], True) + x
    out = mlp(x_new, params["decoder"], False)
    return out.reshape(batch_size, G + L, OUT_DIM)[:, G:, :]


# ----------------------------- main --------------------------------------------
if __name__ == "__main__":
    key = jax.random.PRNGKey(0)
    k_feat, k_start, k_enc, k_ep, k_nd, k_dec = jax.random.split(key, 6)

    params = {
        "edge_enc": _init_mlp(k_enc, 2, ED, HID, True),            # MLP(2, Ed, H, 2, LN)
        "edge_proc": _init_mlp(k_ep, 2 * F + ED, ED, HID, True),   # EdgeProcessor MLP
        "node_proc": _init_mlp(k_nd, F + ED, F, HID, True),        # NodeProcessor MLP
        "decoder": _init_mlp(k_dec, F, OUT_DIM, HID, False),       # node_decoder (no norm)
    }

    # synthetic decoder graph: each lat/lon node receives messages from 2 latent nodes
    src_idx, dst_idx = [], []
    for j in range(L):
        for s in (j % G, (j + 3) % G):
            src_idx.append(s)
            dst_idx.append(G + j)
    row = jnp.asarray(src_idx, jnp.int32)
    col = jnp.asarray(dst_idx, jnp.int32)
    dists = jnp.linspace(0.0, np.pi, row.shape[0]).astype(jnp.float32)
    edge_attr = jnp.stack([jnp.sin(dists), jnp.cos(dists)], axis=-1)   # [E, 2]

    processor_features = jax.random.normal(k_feat, (B * G, F), jnp.float32)
    start_features = jax.random.normal(k_start, (B * L, 2), jnp.float32)  # unused

    # one-time setup (graph + packed weight slabs) — hoisted out of the step
    static_inputs = build_static_inputs(params, edge_attr, row, col)

    fwd = jax.jit(assimilator_decoder_forward)
    out = fwd(processor_features, start_features, *static_inputs)
    out = jax.block_until_ready(out)

    ref = reference_forward(processor_features, params, edge_attr, row, col, B)
    assert out.shape == (B, L, OUT_DIM), out.shape
    np.testing.assert_allclose(np.asarray(out), np.asarray(ref), rtol=2e-3, atol=2e-3)
    print("KERNEL_OK")
</pallas_src>

<mosaic_0001>
module attributes {stable_mosaic.version = 11 : i64} {
  func.func @fused_decoder_kernel(%arg0: memref<16x32xf32, #tpu.memory_space<vmem>>, %arg1: memref<32x8xf32, #tpu.memory_space<vmem>>, %arg2: memref<128x1xi32, #tpu.memory_space<vmem>>, %arg3: memref<1x64xi32, #tpu.memory_space<vmem>>, %arg4: memref<456x32xf32, #tpu.memory_space<vmem>>, %arg5: memref<24x32xf32, #tpu.memory_space<vmem>>, %arg6: memref<32x16xf32, #tpu.memory_space<vmem>>, %arg7: memref<48x32xf32, #tpu.memory_space<vmem>>) attributes {dimension_semantics = [], scalar_prefetch = 0 : i64, scratch_operands = 1 : i64, tpu.core_type = #tpu.core_type<tc>} {
    %cst = arith.constant 0.000000e+00 : f32
    %0 = vector.broadcast %cst : f32 to vector<48x32xf32>
    %c0 = arith.constant 0 : index
    %c0_0 = arith.constant 0 : index
    %1 = vector.load %arg7[%c0, %c0_0] : memref<48x32xf32, #tpu.memory_space<vmem>>, vector<48x32xf32>
    tpu.vector_store %arg7[%c0, %c0_0], %0 {strides = array<i32>} : memref<48x32xf32, #tpu.memory_space<vmem>>, vector<48x32xf32>,
    %c0_1 = arith.constant 0 : index
    %c0_2 = arith.constant 0 : index
    %2 = vector.load %arg0[%c0_1, %c0_2] : memref<16x32xf32, #tpu.memory_space<vmem>>, vector<8x32xf32>
    %c0_3 = arith.constant 0 : index
    %c0_4 = arith.constant 0 : index
    %3 = vector.load %arg7[%c0_3, %c0_4] : memref<48x32xf32, #tpu.memory_space<vmem>>, vector<8x32xf32>
    tpu.vector_store %arg7[%c0_3, %c0_4], %2 {strides = array<i32>} : memref<48x32xf32, #tpu.memory_space<vmem>>, vector<8x32xf32>,
    %c8 = arith.constant 8 : index
    %c0_5 = arith.constant 0 : index
    %4 = vector.load %arg0[%c8, %c0_5] : memref<16x32xf32, #tpu.memory_space<vmem>>, vector<8x32xf32>
    %c24 = arith.constant 24 : index
    %c0_6 = arith.constant 0 : index
    %5 = vector.load %arg7[%c24, %c0_6] : memref<48x32xf32, #tpu.memory_space<vmem>>, vector<8x32xf32>
    tpu.vector_store %arg7[%c24, %c0_6], %4 {strides = array<i32>} : memref<48x32xf32, #tpu.memory_space<vmem>>, vector<8x32xf32>,
    %c0_7 = arith.constant 0 : index
    %c0_8 = arith.constant 0 : index
    %6 = vector.load %arg7[%c0_7, %c0_8] : memref<48x32xf32, #tpu.memory_space<vmem>>, vector<48x32xf32>
    %c0_9 = arith.constant 0 : index
    %c0_10 = arith.constant 0 : index
    %7 = vector.load %arg1[%c0_9, %c0_10] : memref<32x8xf32, #tpu.memory_space<vmem>>, vector<32x8xf32>
    %c0_11 = arith.constant 0 : index
    %c0_12 = arith.constant 0 : index
    %8 = vector.load %arg4[%c0_11, %c0_12] : memref<456x32xf32, #tpu.memory_space<vmem>>, vector<8x32xf32>
    %cst_13 = arith.constant dense<0.000000e+00> : vector<32x32xf32>
    %9 = tpu.matmul %7, %8, %cst_13 {dimension_numbers = #tpu.dot_dimension_numbers<[1], [0], [0], [1], [0, 0, 1, 1], [], []>} : vector<32x8xf32>, vector<8x32xf32>, vector<32x32xf32> -> vector<32x32xf32>
    %c0_14 = arith.constant 0 : index
    %c0_15 = arith.constant 0 : index
    %10 = vector.load %arg5[%c0_14, %c0_15] : memref<24x32xf32, #tpu.memory_space<vmem>>, vector<1x32xf32>
    %11 = vector.broadcast %10 : vector<1x32xf32> to vector<32x32xf32>
    %12 = arith.addf %9, %11 : vector<32x32xf32>
    %cst_16 = arith.constant 5.000000e-01 : f32
    %13 = vector.broadcast %cst_16 : f32 to vector<32x32xf32>
    %14 = arith.mulf %13, %12 : vector<32x32xf32>
    %15 = math.tanh %14 : vector<32x32xf32>
    %cst_17 = arith.constant 1.000000e+00 : f32
    %16 = vector.broadcast %cst_17 : f32 to vector<32x32xf32>
    %17 = arith.addf %15, %16 : vector<32x32xf32>
    %cst_18 = arith.constant 5.000000e-01 : f32
    %18 = vector.broadcast %cst_18 : f32 to vector<32x32xf32>
    %19 = arith.mulf %18, %17 : vector<32x32xf32>
    %20 = arith.mulf %12, %19 : vector<32x32xf32>
    %c8_19 = arith.constant 8 : index
    %c0_20 = arith.constant 0 : index
    %21 = vector.load %arg4[%c8_19, %c0_20] : memref<456x32xf32, #tpu.memory_space<vmem>>, vector<32x32xf32>
    %cst_21 = arith.constant dense<0.000000e+00> : vector<32x32xf32>
    %22 = tpu.matmul %20, %21, %cst_21 {dimension_numbers = #tpu.dot_dimension_numbers<[1], [0], [0], [1], [0, 0, 1, 1], [], []>} : vector<32x32xf32>, vector<32x32xf32>, vector<32x32xf32> -> vector<32x32xf32>
    %c1 = arith.constant 1 : index
    %c0_22 = arith.constant 0 : index
    %23 = vector.load %arg5[%c1, %c0_22] : memref<24x32xf32, #tpu.memory_space<vmem>>, vector<1x32xf32>
    %24 = vector.broadcast %23 : vector<1x32xf32> to vector<32x32xf32>
    %25 = arith.addf %22, %24 : vector<32x32xf32>
    %cst_23 = arith.constant 5.000000e-01 : f32
    %26 = vector.broadcast %cst_23 : f32 to vector<32x32xf32>
    %27 = arith.mulf %26, %25 : vector<32x32xf32>
    %28 = math.tanh %27 : vector<32x32xf32>
    %cst_24 = arith.constant 1.000000e+00 : f32
    %29 = vector.broadcast %cst_24 : f32 to vector<32x32xf32>
    %30 = arith.addf %28, %29 : vector<32x32xf32>
    %cst_25 = arith.constant 5.000000e-01 : f32
    %31 = vector.broadcast %cst_25 : f32 to vector<32x32xf32>
    %32 = arith.mulf %31, %30 : vector<32x32xf32>
    %33 = arith.mulf %25, %32 : vector<32x32xf32>
    %c40 = arith.constant 40 : index
    %c0_26 = arith.constant 0 : index
    %34 = vector.load %arg4[%c40, %c0_26] : memref<456x32xf32, #tpu.memory_space<vmem>>, vector<32x32xf32>
    %cst_27 = arith.constant dense<0.000000e+00> : vector<32x32xf32>
    %35 = tpu.matmul %33, %34, %cst_27 {dimension_numbers = #tpu.dot_dimension_numbers<[1], [0], [0], [1], [0, 0, 1, 1], [], []>} : vector<32x32xf32>, vector<32x32xf32>, vector<32x32xf32> -> vector<32x32xf32>
    %c2 = arith.constant 2 : index
    %c0_28 = arith.constant 0 : index
    %36 = vector.load %arg5[%c2, %c0_28] : memref<24x32xf32, #tpu.memory_space<vmem>>, vector<1x32xf32>
    %37 = vector.broadcast %36 : vector<1x32xf32> to vector<32x32xf32>
    %38 = arith.addf %35, %37 : vector<32x32xf32>
    %c3 = arith.constant 3 : index
    %c0_29 = arith.constant 0 : index
    %39 = vector.load %arg5[%c3, %c0_29] : memref<24x32xf32, #tpu.memory_space<vmem>>, vector<1x32xf32>
    %c4 = arith.constant 4 : index
    %c0_30 = arith.constant 0 : index
    %40 = vector.load %arg5[%c4, %c0_30] : memref<24x32xf32, #tpu.memory_space<vmem>>, vector<1x32xf32>
    %cst_31 = arith.constant dense<0.000000e+00> : vector<32xf32>
    %41 = vector.multi_reduction <add>, %38, %cst_31 [1] : vector<32x32xf32> to vector<32xf32>
    %42 = vector.shape_cast %41 : vector<32xf32> to vector<32x1xf32>
    %cst_32 = arith.constant 3.200000e+01 : f32
    %43 = vector.broadcast %cst_32 : f32 to vector<32x1xf32>
    %44 = arith.divf %42, %43 : vector<32x1xf32>
    %45 = arith.mulf %38, %38 : vector<32x32xf32>
    %cst_33 = arith.constant dense<0.000000e+00> : vector<32xf32>
    %46 = vector.multi_reduction <add>, %45, %cst_33 [1] : vector<32x32xf32> to vector<32xf32>
    %47 = vector.shape_cast %46 : vector<32xf32> to vector<32x1xf32>
    %cst_34 = arith.constant 3.200000e+01 : f32
    %48 = vector.broadcast %cst_34 : f32 to vector<32x1xf32>
    %49 = arith.divf %47, %48 : vector<32x1xf32>
    %50 = arith.mulf %44, %44 : vector<32x1xf32>
    %51 = arith.subf %49, %50 : vector<32x1xf32>
    %52 = vector.broadcast %44 : vector<32x1xf32> to vector<32x32xf32>
    %53 = arith.subf %38, %52 : vector<32x32xf32>
    %cst_35 = arith.constant 9.99999974E-6 : f32
    %54 = vector.broadcast %cst_35 : f32 to vector<32x1xf32>
    %55 = arith.addf %51, %54 : vector<32x1xf32>
    %56 = math.rsqrt %55 : vector<32x1xf32>
    %57 = vector.broadcast %56 : vector<32x1xf32> to vector<32x32xf32>
    %58 = arith.mulf %53, %57 : vector<32x32xf32>
    %59 = vector.broadcast %39 : vector<1x32xf32> to vector<32x32xf32>
    %60 = arith.mulf %58, %59 : vector<32x32xf32>
    %61 = vector.broadcast %40 : vector<1x32xf32> to vector<32x32xf32>
    %62 = arith.addf %60, %61 : vector<32x32xf32>
    %c136 = arith.constant 136 : index
    %c0_36 = arith.constant 0 : index
    %63 = vector.load %arg4[%c136, %c0_36] : memref<456x32xf32, #tpu.memory_space<vmem>>, vector<32x32xf32>
    %cst_37 = arith.constant dense<0.000000e+00> : vector<32x32xf32>
    %64 = tpu.matmul %62, %63, %cst_37 {dimension_numbers = #tpu.dot_dimension_numbers<[1], [0], [0], [1], [0, 0, 1, 1], [], []>} : vector<32x32xf32>, vector<32x32xf32>, vector<32x32xf32> -> vector<32x32xf32>
    %65 = tpu.concatenate %64, %64 in 0 : vector<32x32xf32>, vector<32x32xf32> -> vector<64x32xf32>
    %66 = tpu.concatenate %62, %62 in 0 : vector<32x32xf32>, vector<32x32xf32> -> vector<64x32xf32>
    %c0_38 = arith.constant 0 : index
    %c0_39 = arith.constant 0 : index
    %67 = vector.load %arg2[%c0_38, %c0_39] : memref<128x1xi32, #tpu.memory_space<vmem>>, vector<128x1xi32>
    %68 = tpu.iota {dimensions = array<i32: 1>} : vector<128x48xi32>
    %69 = vector.broadcast %67 : vector<128x1xi32> to vector<128x48xi32>
    %70 = arith.cmpi eq, %68, %69 : vector<128x48xi32>
    %71 = arith.extui %70 : vector<128x48xi1> to vector<128x48xi32>
    %72 = arith.sitofp %71 : vector<128x48xi32> to vector<128x48xf32>
    %cst_40 = arith.constant dense<0.000000e+00> : vector<128x32xf32>
    %73 = tpu.matmul %72, %6, %cst_40 {dimension_numbers = #tpu.dot_dimension_numbers<[1], [0], [0], [1], [0, 0, 1, 1], [], []>} : vector<128x48xf32>, vector<48x32xf32>, vector<128x32xf32> -> vector<128x32xf32>
    %74 = vector.extract_strided_slice %73 {offsets = [0, 0], sizes = [64, 32], strides = [1, 1]} : vector<128x32xf32> to vector<64x32xf32>
    %75 = vector.extract_strided_slice %73 {offsets = [64, 0], sizes = [64, 32], strides = [1, 1]} : vector<128x32xf32> to vector<64x32xf32>
    %c72 = arith.constant 72 : index
    %c0_41 = arith.constant 0 : index
    %76 = vector.load %arg4[%c72, %c0_41] : memref<456x32xf32, #tpu.memory_space<vmem>>, vector<32x32xf32>
    %cst_42 = arith.constant dense<0.000000e+00> : vector<64x32xf32>
    %77 = tpu.matmul %74, %76, %cst_42 {dimension_numbers = #tpu.dot_dimension_numbers<[1], [0], [0], [1], [0, 0, 1, 1], [], []>} : vector<64x32xf32>, vector<32x32xf32>, vector<64x32xf32> -> vector<64x32xf32>
    %c104 = arith.constant 104 : index
    %c0_43 = arith.constant 0 : index
    %78 = vector.load %arg4[%c104, %c0_43] : memref<456x32xf32, #tpu.memory_space<vmem>>, vector<32x32xf32>
    %cst_44 = arith.constant dense<0.000000e+00> : vector<64x32xf32>
    %79 = tpu.matmul %75, %78, %cst_44 {dimension_numbers = #tpu.dot_dimension_numbers<[1], [0], [0], [1], [0, 0, 1, 1], [], []>} : vector<64x32xf32>, vector<32x32xf32>, vector<64x32xf32> -> vector<64x32xf32>
    %80 = arith.addf %77, %79 : vector<64x32xf32>
    %81 = arith.addf %80, %65 : vector<64x32xf32>
    %c5 = arith.constant 5 : index
    %c0_45 = arith.constant 0 : index
    %82 = vector.load %arg5[%c5, %c0_45] : memref<24x32xf32, #tpu.memory_space<vmem>>, vector<1x32xf32>
    %83 = vector.broadcast %82 : vector<1x32xf32> to vector<64x32xf32>
    %84 = arith.addf %81, %83 : vector<64x32xf32>
    %cst_46 = arith.constant 5.000000e-01 : f32
    %85 = vector.broadcast %cst_46 : f32 to vector<64x32xf32>
    %86 = arith.mulf %85, %84 : vector<64x32xf32>
    %87 = math.tanh %86 : vector<64x32xf32>
    %cst_47 = arith.constant 1.000000e+00 : f32
    %88 = vector.broadcast %cst_47 : f32 to vector<64x32xf32>
    %89 = arith.addf %87, %88 : vector<64x32xf32>
    %cst_48 = arith.constant 5.000000e-01 : f32
    %90 = vector.broadcast %cst_48 : f32 to vector<64x32xf32>
    %91 = arith.mulf %90, %89 : vector<64x32xf32>
    %92 = arith.mulf %84, %91 : vector<64x32xf32>
    %c168 = arith.constant 168 : index
    %c0_49 = arith.constant 0 : index
    %93 = vector.load %arg4[%c168, %c0_49] : memref<456x32xf32, #tpu.memory_space<vmem>>, vector<32x32xf32>
    %cst_50 = arith.constant dense<0.000000e+00> : vector<64x32xf32>
    %94 = tpu.matmul %92, %93, %cst_50 {dimension_numbers = #tpu.dot_dimension_numbers<[1], [0], [0], [1], [0, 0, 1, 1], [], []>} : vector<64x32xf32>, vector<32x32xf32>, vector<64x32xf32> -> vector<64x32xf32>
    %c6 = arith.constant 6 : index
    %c0_51 = arith.constant 0 : index
    %95 = vector.load %arg5[%c6, %c0_51] : memref<24x32xf32, #tpu.memory_space<vmem>>, vector<1x32xf32>
    %96 = vector.broadcast %95 : vector<1x32xf32> to vector<64x32xf32>
    %97 = arith.addf %94, %96 : vector<64x32xf32>
    %cst_52 = arith.constant 5.000000e-01 : f32
    %98 = vector.broadcast %cst_52 : f32 to vector<64x32xf32>
    %99 = arith.mulf %98, %97 : vector<64x32xf32>
    %100 = math.tanh %99 : vector<64x32xf32>
    %cst_53 = arith.constant 1.000000e+00 : f32
    %101 = vector.broadcast %cst_53 : f32 to vector<64x32xf32>
    %102 = arith.addf %100, %101 : vector<64x32xf32>
    %cst_54 = arith.constant 5.000000e-01 : f32
    %103 = vector.broadcast %cst_54 : f32 to vector<64x32xf32>
    %104 = arith.mulf %103, %102 : vector<64x32xf32>
    %105 = arith.mulf %97, %104 : vector<64x32xf32>
    %c200 = arith.constant 200 : index
    %c0_55 = arith.constant 0 : index
    %106 = vector.load %arg4[%c200, %c0_55] : memref<456x32xf32, #tpu.memory_space<vmem>>, vector<32x32xf32>
    %cst_56 = arith.constant dense<0.000000e+00> : vector<64x32xf32>
    %107 = tpu.matmul %105, %106, %cst_56 {dimension_numbers = #tpu.dot_dimension_numbers<[1], [0], [0], [1], [0, 0, 1, 1], [], []>} : vector<64x32xf32>, vector<32x32xf32>, vector<64x32xf32> -> vector<64x32xf32>
    %c7 = arith.constant 7 : index
    %c0_57 = arith.constant 0 : index
    %108 = vector.load %arg5[%c7, %c0_57] : memref<24x32xf32, #tpu.memory_space<vmem>>, vector<1x32xf32>
    %109 = vector.broadcast %108 : vector<1x32xf32> to vector<64x32xf32>
    %110 = arith.addf %107, %109 : vector<64x32xf32>
    %c8_58 = arith.constant 8 : index
    %c0_59 = arith.constant 0 : index
    %111 = vector.load %arg5[%c8_58, %c0_59] : memref<24x32xf32, #tpu.memory_space<vmem>>, vector<1x32xf32>
    %c9 = arith.constant 9 : index
    %c0_60 = arith.constant 0 : index
    %112 = vector.load %arg5[%c9, %c0_60] : memref<24x32xf32, #tpu.memory_space<vmem>>, vector<1x32xf32>
    %cst_61 = arith.constant dense<0.000000e+00> : vector<64xf32>
    %113 = vector.multi_reduction <add>, %110, %cst_61 [1] : vector<64x32xf32> to vector<64xf32>
    %114 = vector.shape_cast %113 : vector<64xf32> to vector<64x1xf32>
    %cst_62 = arith.constant 3.200000e+01 : f32
    %115 = vector.broadcast %cst_62 : f32 to vector<64x1xf32>
    %116 = arith.divf %114, %115 : vector<64x1xf32>
    %117 = arith.mulf %110, %110 : vector<64x32xf32>
    %cst_63 = arith.constant dense<0.000000e+00> : vector<64xf32>
    %118 = vector.multi_reduction <add>, %117, %cst_63 [1] : vector<64x32xf32> to vector<64xf32>
    %119 = vector.shape_cast %118 : vector<64xf32> to vector<64x1xf32>
    %cst_64 = arith.constant 3.200000e+01 : f32
    %120 = vector.broadcast %cst_64 : f32 to vector<64x1xf32>
    %121 = arith.divf %119, %120 : vector<64x1xf32>
    %122 = arith.mulf %116, %116 : vector<64x1xf32>
    %123 = arith.subf %121, %122 : vector<64x1xf32>
    %124 = vector.broadcast %116 : vector<64x1xf32> to vector<64x32xf32>
    %125 = arith.subf %110, %124 : vector<64x32xf32>
    %cst_65 = arith.constant 9.99999974E-6 : f32
    %126 = vector.broadcast %cst_65 : f32 to vector<64x1xf32>
    %127 = arith.addf %123, %126 : vector<64x1xf32>
    %128 = math.rsqrt %127 : vector<64x1xf32>
    %129 = vector.broadcast %128 : vector<64x1xf32> to vector<64x32xf32>
    %130 = arith.mulf %125, %129 : vector<64x32xf32>
    %131 = vector.broadcast %111 : vector<1x32xf32> to vector<64x32xf32>
    %132 = arith.mulf %130, %131 : vector<64x32xf32>
    %133 = vector.broadcast %112 : vector<1x32xf32> to vector<64x32xf32>
    %134 = arith.addf %132, %133 : vector<64x32xf32>
    %135 = arith.addf %134, %66 : vector<64x32xf32>
    %c0_66 = arith.constant 0 : index
    %c0_67 = arith.constant 0 : index
    %136 = vector.load %arg3[%c0_66, %c0_67] : memref<1x64xi32, #tpu.memory_space<vmem>>, vector<1x64xi32>
    %137 = tpu.iota {dimensions = array<i32: 0>} : vector<48x64xi32>
    %138 = vector.broadcast %136 : vector<1x64xi32> to vector<48x64xi32>
    %139 = arith.cmpi eq, %137, %138 : vector<48x64xi32>
    %140 = arith.extui %139 : vector<48x64xi1> to vector<48x64xi32>
    %141 = arith.sitofp %140 : vector<48x64xi32> to vector<48x64xf32>
    %cst_68 = arith.constant dense<0.000000e+00> : vector<48x32xf32>
    %142 = tpu.matmul %141, %135, %cst_68 {dimension_numbers = #tpu.dot_dimension_numbers<[1], [0], [0], [1], [0, 0, 1, 1], [], []>} : vector<48x64xf32>, vector<64x32xf32>, vector<48x32xf32> -> vector<48x32xf32>
    %c232 = arith.constant 232 : index
    %c0_69 = arith.constant 0 : index
    %143 = vector.load %arg4[%c232, %c0_69] : memref<456x32xf32, #tpu.memory_space<vmem>>, vector<32x32xf32>
    %cst_70 = arith.constant dense<0.000000e+00> : vector<48x32xf32>
    %144 = tpu.matmul %6, %143, %cst_70 {dimension_numbers = #tpu.dot_dimension_numbers<[1], [0], [0], [1], [0, 0, 1, 1], [], []>} : vector<48x32xf32>, vector<32x32xf32>, vector<48x32xf32> -> vector<48x32xf32>
    %c264 = arith.constant 264 : index
    %c0_71 = arith.constant 0 : index
    %145 = vector.load %arg4[%c264, %c0_71] : memref<456x32xf32, #tpu.memory_space<vmem>>, vector<32x32xf32>
    %cst_72 = arith.constant dense<0.000000e+00> : vector<48x32xf32>
    %146 = tpu.matmul %142, %145, %cst_72 {dimension_numbers = #tpu.dot_dimension_numbers<[1], [0], [0], [1], [0, 0, 1, 1], [], []>} : vector<48x32xf32>, vector<32x32xf32>, vector<48x32xf32> -> vector<48x32xf32>
    %147 = arith.addf %144, %146 : vector<48x32xf32>
    %c10 = arith.constant 10 : index
    %c0_73 = arith.constant 0 : index
    %148 = vector.load %arg5[%c10, %c0_73] : memref<24x32xf32, #tpu.memory_space<vmem>>, vector<1x32xf32>
    %149 = vector.broadcast %148 : vector<1x32xf32> to vector<48x32xf32>
    %150 = arith.addf %147, %149 : vector<48x32xf32>
    %cst_74 = arith.constant 5.000000e-01 : f32
    %151 = vector.broadcast %cst_74 : f32 to vector<48x32xf32>
    %152 = arith.mulf %151, %150 : vector<48x32xf32>
    %153 = math.tanh %152 : vector<48x32xf32>
    %cst_75 = arith.constant 1.000000e+00 : f32
    %154 = vector.broadcast %cst_75 : f32 to vector<48x32xf32>
    %155 = arith.addf %153, %154 : vector<48x32xf32>
    %cst_76 = arith.constant 5.000000e-01 : f32
    %156 = vector.broadcast %cst_76 : f32 to vector<48x32xf32>
    %157 = arith.mulf %156, %155 : vector<48x32xf32>
    %158 = arith.mulf %150, %157 : vector<48x32xf32>
    %c296 = arith.constant 296 : index
    %c0_77 = arith.constant 0 : index
    %159 = vector.load %arg4[%c296, %c0_77] : memref<456x32xf32, #tpu.memory_space<vmem>>, vector<32x32xf32>
    %cst_78 = arith.constant dense<0.000000e+00> : vector<48x32xf32>
    %160 = tpu.matmul %158, %159, %cst_78 {dimension_numbers = #tpu.dot_dimension_numbers<[1], [0], [0], [1], [0, 0, 1, 1], [], []>} : vector<48x32xf32>, vector<32x32xf32>, vector<48x32xf32> -> vector<48x32xf32>
    %c11 = arith.constant 11 : index
    %c0_79 = arith.constant 0 : index
    %161 = vector.load %arg5[%c11, %c0_79] : memref<24x32xf32, #tpu.memory_space<vmem>>, vector<1x32xf32>
    %162 = vector.broadcast %161 : vector<1x32xf32> to vector<48x32xf32>
    %163 = arith.addf %160, %162 : vector<48x32xf32>
    %cst_80 = arith.constant 5.000000e-01 : f32
    %164 = vector.broadcast %cst_80 : f32 to vector<48x32xf32>
    %165 = arith.mulf %164, %163 : vector<48x32xf32>
    %166 = math.tanh %165 : vector<48x32xf32>
    %cst_81 = arith.constant 1.000000e+00 : f32
    %167 = vector.broadcast %cst_81 : f32 to vector<48x32xf32>
    %168 = arith.addf %166, %167 : vector<48x32xf32>
    %cst_82 = arith.constant 5.000000e-01 : f32
    %169 = vector.broadcast %cst_82 : f32 to vector<48x32xf32>
    %170 = arith.mulf %169, %168 : vector<48x32xf32>
    %171 = arith.mulf %163, %170 : vector<48x32xf32>
    %c328 = arith.constant 328 : index
    %c0_83 = arith.constant 0 : index
    %172 = vector.load %arg4[%c328, %c0_83] : memref<456x32xf32, #tpu.memory_space<vmem>>, vector<32x32xf32>
    %cst_84 = arith.constant dense<0.000000e+00> : vector<48x32xf32>
    %173 = tpu.matmul %171, %172, %cst_84 {dimension_numbers = #tpu.dot_dimension_numbers<[1], [0], [0], [1], [0, 0, 1, 1], [], []>} : vector<48x32xf32>, vector<32x32xf32>, vector<48x32xf32> -> vector<48x32xf32>
    %c12 = arith.constant 12 : index
    %c0_85 = arith.constant 0 : index
    %174 = vector.load %arg5[%c12, %c0_85] : memref<24x32xf32, #tpu.memory_space<vmem>>, vector<1x32xf32>
    %175 = vector.broadcast %174 : vector<1x32xf32> to vector<48x32xf32>
    %176 = arith.addf %173, %175 : vector<48x32xf32>
    %c13 = arith.constant 13 : index
    %c0_86 = arith.constant 0 : index
    %177 = vector.load %arg5[%c13, %c0_86] : memref<24x32xf32, #tpu.memory_space<vmem>>, vector<1x32xf32>
    %c14 = arith.constant 14 : index
    %c0_87 = arith.constant 0 : index
    %178 = vector.load %arg5[%c14, %c0_87] : memref<24x32xf32, #tpu.memory_space<vmem>>, vector<1x32xf32>
    %cst_88 = arith.constant dense<0.000000e+00> : vector<48xf32>
    %179 = vector.multi_reduction <add>, %176, %cst_88 [1] : vector<48x32xf32> to vector<48xf32>
    %180 = vector.shape_cast %179 : vector<48xf32> to vector<48x1xf32>
    %cst_89 = arith.constant 3.200000e+01 : f32
    %181 = vector.broadcast %cst_89 : f32 to vector<48x1xf32>
    %182 = arith.divf %180, %181 : vector<48x1xf32>
    %183 = arith.mulf %176, %176 : vector<48x32xf32>
    %cst_90 = arith.constant dense<0.000000e+00> : vector<48xf32>
    %184 = vector.multi_reduction <add>, %183, %cst_90 [1] : vector<48x32xf32> to vector<48xf32>
    %185 = vector.shape_cast %184 : vector<48xf32> to vector<48x1xf32>
    %cst_91 = arith.constant 3.200000e+01 : f32
    %186 = vector.broadcast %cst_91 : f32 to vector<48x1xf32>
    %187 = arith.divf %185, %186 : vector<48x1xf32>
    %188 = arith.mulf %182, %182 : vector<48x1xf32>
    %189 = arith.subf %187, %188 : vector<48x1xf32>
    %190 = vector.broadcast %182 : vector<48x1xf32> to vector<48x32xf32>
    %191 = arith.subf %176, %190 : vector<48x32xf32>
    %cst_92 = arith.constant 9.99999974E-6 : f32
    %192 = vector.broadcast %cst_92 : f32 to vector<48x1xf32>
    %193 = arith.addf %189, %192 : vector<48x1xf32>
    %194 = math.rsqrt %193 : vector<48x1xf32>
    %195 = vector.broadcast %194 : vector<48x1xf32> to vector<48x32xf32>
    %196 = arith.mulf %191, %195 : vector<48x32xf32>
    %197 = vector.broadcast %177 : vector<1x32xf32> to vector<48x32xf32>
    %198 = arith.mulf %196, %197 : vector<48x32xf32>
    %199 = vector.broadcast %178 : vector<1x32xf32> to vector<48x32xf32>
    %200 = arith.addf %198, %199 : vector<48x32xf32>
    %201 = arith.addf %200, %6 : vector<48x32xf32>
    %202 = vector.extract_strided_slice %201 {offsets = [8, 0], sizes = [16, 32], strides = [1, 1]} : vector<48x32xf32> to vector<16x32xf32>
    %203 = vector.extract_strided_slice %201 {offsets = [32, 0], sizes = [16, 32], strides = [1, 1]} : vector<48x32xf32> to vector<16x32xf32>
    %204 = tpu.concatenate %202, %203 in 0 : vector<16x32xf32>, vector<16x32xf32> -> vector<32x32xf32>
    %c360 = arith.constant 360 : index
    %c0_93 = arith.constant 0 : index
    %205 = vector.load %arg4[%c360, %c0_93] : memref<456x32xf32, #tpu.memory_space<vmem>>, vector<32x32xf32>
    %cst_94 = arith.constant dense<0.000000e+00> : vector<32x32xf32>
    %206 = tpu.matmul %204, %205, %cst_94 {dimension_numbers = #tpu.dot_dimension_numbers<[1], [0], [0], [1], [0, 0, 1, 1], [], []>} : vector<32x32xf32>, vector<32x32xf32>, vector<32x32xf32> -> vector<32x32xf32>
    %c15 = arith.constant 15 : index
    %c0_95 = arith.constant 0 : index
    %207 = vector.load %arg5[%c15, %c0_95] : memref<24x32xf32, #tpu.memory_space<vmem>>, vector<1x32xf32>
    %208 = vector.broadcast %207 : vector<1x32xf32> to vector<32x32xf32>
    %209 = arith.addf %206, %208 : vector<32x32xf32>
    %cst_96 = arith.constant 5.000000e-01 : f32
    %210 = vector.broadcast %cst_96 : f32 to vector<32x32xf32>
    %211 = arith.mulf %210, %209 : vector<32x32xf32>
    %212 = math.tanh %211 : vector<32x32xf32>
    %cst_97 = arith.constant 1.000000e+00 : f32
    %213 = vector.broadcast %cst_97 : f32 to vector<32x32xf32>
    %214 = arith.addf %212, %213 : vector<32x32xf32>
    %cst_98 = arith.constant 5.000000e-01 : f32
    %215 = vector.broadcast %cst_98 : f32 to vector<32x32xf32>
    %216 = arith.mulf %215, %214 : vector<32x32xf32>
    %217 = arith.mulf %209, %216 : vector<32x32xf32>
    %c392 = arith.constant 392 : index
    %c0_99 = arith.constant 0 : index
    %218 = vector.load %arg4[%c392, %c0_99] : memref<456x32xf32, #tpu.memory_space<vmem>>, vector<32x32xf32>
    %cst_100 = arith.constant dense<0.000000e+00> : vector<32x32xf32>
    %219 = tpu.matmul %217, %218, %cst_100 {dimension_numbers = #tpu.dot_dimension_numbers<[1], [0], [0], [1], [0, 0, 1, 1], [], []>} : vector<32x32xf32>, vector<32x32xf32>, vector<32x32xf32> -> vector<32x32xf32>
    %c16 = arith.constant 16 : index
    %c0_101 = arith.constant 0 : index
    %220 = vector.load %arg5[%c16, %c0_101] : memref<24x32xf32, #tpu.memory_space<vmem>>, vector<1x32xf32>
    %221 = vector.broadcast %220 : vector<1x32xf32> to vector<32x32xf32>
    %222 = arith.addf %219, %221 : vector<32x32xf32>
    %cst_102 = arith.constant 5.000000e-01 : f32
    %223 = vector.broadcast %cst_102 : f32 to vector<32x32xf32>
    %224 = arith.mulf %223, %222 : vector<32x32xf32>
    %225 = math.tanh %224 : vector<32x32xf32>
    %cst_103 = arith.constant 1.000000e+00 : f32
    %226 = vector.broadcast %cst_103 : f32 to vector<32x32xf32>
    %227 = arith.addf %225, %226 : vector<32x32xf32>
    %cst_104 = arith.constant 5.000000e-01 : f32
    %228 = vector.broadcast %cst_104 : f32 to vector<32x32xf32>
    %229 = arith.mulf %228, %227 : vector<32x32xf32>
    %230 = arith.mulf %222, %229 : vector<32x32xf32>
    %c424 = arith.constant 424 : index
    %c0_105 = arith.constant 0 : index
    %231 = vector.load %arg4[%c424, %c0_105] : memref<456x32xf32, #tpu.memory_space<vmem>>, vector<32x32xf32>
    %cst_106 = arith.constant dense<0.000000e+00> : vector<32x32xf32>
    %232 = tpu.matmul %230, %231, %cst_106 {dimension_numbers = #tpu.dot_dimension_numbers<[1], [0], [0], [1], [0, 0, 1, 1], [], []>} : vector<32x32xf32>, vector<32x32xf32>, vector<32x32xf32> -> vector<32x32xf32>
    %c17 = arith.constant 17 : index
    %c0_107 = arith.constant 0 : index
    %233 = vector.load %arg5[%c17, %c0_107] : memref<24x32xf32, #tpu.memory_space<vmem>>, vector<1x32xf32>
    %234 = vector.broadcast %233 : vector<1x32xf32> to vector<32x32xf32>
    %235 = arith.addf %232, %234 : vector<32x32xf32>
    %236 = vector.extract_strided_slice %235 {offsets = [0, 0], sizes = [32, 16], strides = [1, 1]} : vector<32x32xf32> to vector<32x16xf32>
    %c0_108 = arith.constant 0 : index
    %c0_109 = arith.constant 0 : index
    %237 = vector.load %arg6[%c0_108, %c0_109] : memref<32x16xf32, #tpu.memory_space<vmem>>, vector<32x16xf32>
    tpu.vector_store %arg6[%c0_108, %c0_109], %236 {strides = array<i32>} : memref<32x16xf32, #tpu.memory_space<vmem>>, vector<32x16xf32>,
    return
  }
}

</mosaic_0001>

<llo_original>
// kernel: assimilator_decoder_forward.1
$region0: #{assimilator_decoder_forward.1}
  #allocation0 [shape = 'u32[]', space=smem, size = 0x4, offset = 0x4, fixed_abs, tag = 'smem constant byte address 0x4 - core index']
  #allocation1 [shape = 'u32[72,128]{1,0:T(1,128)}', space=vmem, size = 0x9000, scoped, tag = 'internal scratch']
  #allocation2 [shape = 'f32[48,32]{1,0:T(8,128)}', space=vmem, size = 0x6000, scoped, tag = 'scratch operand']
  %s0 = inlined_call_operand.vmem [shape: f32[16,32], index: 0, kind: input, shape index: {}]
  %s1 = inlined_call_operand.vmem [shape: f32[32,8], index: 1, kind: input, shape index: {}]
  %s2 = inlined_call_operand.vmem [shape: s32[128,1], index: 2, kind: input, shape index: {}]
  %s3 = inlined_call_operand.vmem [shape: s32[1,64], index: 3, kind: input, shape index: {}]
  %s4 = inlined_call_operand.vmem [shape: f32[456,32], index: 4, kind: input, shape index: {}]
  %s5 = inlined_call_operand.vmem [shape: f32[24,32], index: 5, kind: input, shape index: {}]
  %s6 = inlined_call_operand.hbm [shape: f32[32,16], index: 6, kind: output, shape index: {}]
  %s7 = sld [smem:[#allocation0]]
  $region34: #{assimilator_decoder_forward.1} parent=0
    _
  %s9 = ssub.s32 1, %s7
  %s10 = scalar_select 0, %s9, %s7
  $region1: #{assimilator_decoder_forward.1} parent=0
    #allocation3 [shape = 'u8[16384]{0}', space=vmem, size = 0x4000, scoped, tag = 'output window, operand 0, single buffered']
    #allocation4 [shape = 's32[1]{0}', space=sflag, size = 0x4, scoped, tag = 'scoped memory for assimilator_decoder_forward.1']
    %11 = vsyncpa [#allocation4], 0
    // Predicated region
    $region2: #{assimilator_decoder_forward.1} parent=1 // pred_check
      _
    $region3: #{assimilator_decoder_forward.1} parent=1 // pred_check_branch
      %13 = sbr.rel (0) target = $region5
    $region4: #{assimilator_decoder_forward.1} parent=1 // pred_region
      _
    $region5: #{assimilator_decoder_forward.1} parent=1 // pred_fallthru
      _
    // Predicated region
    $region6: #{assimilator_decoder_forward.1} parent=1 // pred_check
      _
    $region7: #{assimilator_decoder_forward.1} parent=1 // pred_check_branch
      %15 = sbr.rel (0) target = $region9
    $region8: #{assimilator_decoder_forward.1} parent=1 // pred_region
      _
    $region9: #{assimilator_decoder_forward.1} parent=1 // pred_fallthru
      _
    // Predicated region
    $region10: #{assimilator_decoder_forward.1} parent=1 // pred_check
      _
    $region11: #{assimilator_decoder_forward.1} parent=1 // pred_check_branch
      %17 = sbr.rel (0) target = $region13
    $region12: #{assimilator_decoder_forward.1} parent=1 // pred_region
      _
    $region13: #{assimilator_decoder_forward.1} parent=1 // pred_fallthru
      _
    // Predicated region
    $region14: #{assimilator_decoder_forward.1} parent=1 // pred_check
      _
    $region15: #{assimilator_decoder_forward.1} parent=1 // pred_check_branch
      %19 = sbr.rel (0) target = $region17
    $region16: #{assimilator_decoder_forward.1} parent=1 // pred_region
      _
    $region17: #{assimilator_decoder_forward.1} parent=1 // pred_fallthru
      _
    // Predicated region
    $region18: #{assimilator_decoder_forward.1} parent=1 // pred_check
      _
    $region19: #{assimilator_decoder_forward.1} parent=1 // pred_check_branch
      %21 = sbr.rel (0) target = $region21
    $region20: #{assimilator_decoder_forward.1} parent=1 // pred_region
      _
    $region21: #{assimilator_decoder_forward.1} parent=1 // pred_fallthru
      _
    // Predicated region
    $region22: #{assimilator_decoder_forward.1} parent=1 // pred_check
      _
    $region23: #{assimilator_decoder_forward.1} parent=1 // pred_check_branch
      %23 = sbr.rel (0) target = $region25
    $region24: #{assimilator_decoder_forward.1} parent=1 // pred_region
      _
    $region25: #{assimilator_decoder_forward.1} parent=1 // pred_fallthru
      _
    %vm24 = vcmask 261120
    %25 = vst.msk [vmem:[#allocation2] sm:$0xff] %vm24, 0.0
    %26 = vst.msk [vmem:[#allocation2 + $0x8] sm:$0xff] %vm24, 0.0
    %27 = vst.msk [vmem:[#allocation2 + $0x10] sm:$0xff] %vm24, 0.0
    %28 = vst.msk [vmem:[#allocation2 + $0x18] sm:$0xff] %vm24, 0.0
    %29 = vst.msk [vmem:[#allocation2 + $0x20] sm:$0xff] %vm24, 0.0
    %30 = vst.msk [vmem:[#allocation2 + $0x28] sm:$0xff] %vm24, 0.0
    %v31 = vld [vmem:[%s0] sm:$0xff]
    %32 = vst.msk [vmem:[#allocation2] sm:$0xff] %vm24, %v31
    %v33 = vld [vmem:[%s0 + $0x8] sm:$0xff]
    %34 = vst.msk [vmem:[#allocation2 + $0x18] sm:$0xff] %vm24, %v33
    %v35 = vld [vmem:[#allocation2] sm:$0xff]
    %v36 = vld [vmem:[#allocation2 + $0x8] sm:$0xff]
    %v37 = vld [vmem:[#allocation2 + $0x10] sm:$0xff]
    %v38 = vld [vmem:[#allocation2 + $0x18] sm:$0xff]
    %v39 = vld [vmem:[#allocation2 + $0x20] sm:$0xff]
    %v40 = vld [vmem:[#allocation2 + $0x28] sm:$0xff]
    %v41 = vld [vmem:[%s1] sm:$0xff]
    %v42 = vld [vmem:[%s1 + $0x8] sm:$0xff]
    %v43 = vld [vmem:[%s1 + $0x10] sm:$0xff]
    %v44 = vld [vmem:[%s1 + $0x18] sm:$0xff]
    %v45 = vld [vmem:[%s4] sm:$0xff]
    %v46 = vld [vmem:[%s5] sm:$0x1]
    %v47 = vperm.slane %v46, 0
    %vm48 = vcmask 64512
    %v50 = vsel %vm48, %v41, 0
    %v53 = vsel %vm48, %v42, 0
    %v56 = vsel %vm48, %v43, 0
    %v59 = vsel %vm48, %v44, 0
    %61 = vmatpush.msra.mxu0 0.0
    %62 = vmatpush.msra.mxu0 0.0
    %63 = vmatpush.msra.mxu0 0.0
    %64 = vmatpush.msra.mxu0 0.0
    %65 = vmatpush.msra.mxu0 0.0
    %66 = vmatpush.msra.mxu0 0.0
    %67 = vmatpush.msra.mxu0 0.0
    %68 = vmatpush.msra.mxu0 0.0
    %69 = vmatpush.msra.mxu0 0.0
    %70 = vmatpush.msra.mxu0 0.0
    %71 = vmatpush.msra.mxu0 0.0
    %72 = vmatpush.msra.mxu0 0.0
    %73 = vmatpush.msra.mxu0 0.0
    %74 = vmatpush.msra.mxu0 0.0
    %75 = vmatpush.msra.mxu0 0.0
    %76 = vmatpush.msra.mxu0 %v45
    %77 = vmatmul.f32.gmra.mxu0 %v50
    %v78 = vpop.f32.mrf.mxu0
    %v79 = vadd.f32 %v47, %v78
    %80 = vmatmul.f32.gmra.mxu0 %v53
    %v81 = vpop.f32.mrf.mxu0
    %v82 = vadd.f32 %v47, %v81
    %83 = vmatmul.f32.gmra.mxu0 %v56
    %v84 = vpop.f32.mrf.mxu0
    %v85 = vadd.f32 %v47, %v84
    %86 = vmatmul.f32.gmra.mxu0 %v59
    %v87 = vpop.f32.mrf.mxu0
    %v88 = vadd.f32 %v47, %v87
    %89 = vdwg.mxu0
    %v90 = vmul.f32 %v79, 0.5
    %v91 = vmul.f32 %v82, 0.5
    %v92 = vmul.f32 %v85, 0.5
    %v93 = vmul.f32 %v88, 0.5
    %v94 = vtanh.pop %v90
    %v95 = vtanh.pop %v91
    %v96 = vtanh.pop %v92
    %v97 = vtanh.pop %v93
    %v98 = vadd.f32 %v94, 1.0
    %v99 = vadd.f32 %v95, 1.0
    %v100 = vadd.f32 %v96, 1.0
    %v101 = vadd.f32 %v97, 1.0
    %v102 = vmul.f32 %v98, 0.5
    %v103 = vmul.f32 %v99, 0.5
    %v104 = vmul.f32 %v100, 0.5
    %v105 = vmul.f32 %v101, 0.5
    %v106 = vmul.f32 %v79, %v102
    %v107 = vmul.f32 %v82, %v103
    %v108 = vmul.f32 %v85, %v104
    %v109 = vmul.f32 %v88, %v105
    %v110 = vld [vmem:[%s4 + $0x8] sm:$0xff]
    %v111 = vld [vmem:[%s4 + $0x10] sm:$0xff]
    %v112 = vld [vmem:[%s4 + $0x18] sm:$0xff]
    %v113 = vld [vmem:[%s4 + $0x20] sm:$0xff]
    %v114 = vld [vmem:[%s5 + $0x1] sm:$0x1]
    %v115 = vperm.slane %v114, 0
    %v117 = vsel %vm24, %v106, 0
    %v120 = vsel %vm24, %v107, 0
    %v123 = vsel %vm24, %v108, 0
    %v126 = vsel %vm24, %v109, 0
    %128 = vmatpush.msra.mxu0 0.0
    %129 = vmatpush.msra.mxu0 0.0
    %130 = vmatpush.msra.mxu0 0.0
    %131 = vmatpush.msra.mxu0 0.0
    %132 = vmatpush.msra.mxu0 0.0
    %133 = vmatpush.msra.mxu0 0.0
    %134 = vmatpush.msra.mxu0 0.0
    %135 = vmatpush.msra.mxu0 0.0
    %136 = vmatpush.msra.mxu0 0.0
    %137 = vmatpush.msra.mxu0 0.0
    %138 = vmatpush.msra.mxu0 0.0
    %139 = vmatpush.msra.mxu0 0.0
    %140 = vmatpush.msra.mxu0 %v113
    %141 = vmatpush.msra.mxu0 %v112
    %142 = vmatpush.msra.mxu0 %v111
    %143 = vmatpush.msra.mxu0 %v110
    %144 = vmatmul.f32.gmra.mxu0 %v117
    %v145 = vpop.f32.mrf.mxu0
    %v146 = vadd.f32 %v115, %v145
    %147 = vmatmul.f32.gmra.mxu0 %v120
    %v148 = vpop.f32.mrf.mxu0
    %v149 = vadd.f32 %v115, %v148
    %150 = vmatmul.f32.gmra.mxu0 %v123
    %v151 = vpop.f32.mrf.mxu0
    %v152 = vadd.f32 %v115, %v151
    %153 = vmatmul.f32.gmra.mxu0 %v126
    %v154 = vpop.f32.mrf.mxu0
    %v155 = vadd.f32 %v115, %v154
    %156 = vdwg.mxu0
    %v157 = vmul.f32 %v146, 0.5
    %v158 = vmul.f32 %v149, 0.5
    %v159 = vmul.f32 %v152, 0.5
    %v160 = vmul.f32 %v155, 0.5
    %v161 = vtanh.pop %v157
    %v162 = vtanh.pop %v158
    %v163 = vtanh.pop %v159
    %v164 = vtanh.pop %v160
    %v165 = vadd.f32 %v161, 1.0
    %v166 = vadd.f32 %v162, 1.0
    %v167 = vadd.f32 %v163, 1.0
    %v168 = vadd.f32 %v164, 1.0
    %v169 = vmul.f32 %v165, 0.5
    %v170 = vmul.f32 %v166, 0.5
    %v171 = vmul.f32 %v167, 0.5
    %v172 = vmul.f32 %v168, 0.5
    %v173 = vmul.f32 %v146, %v169
    %v174 = vmul.f32 %v149, %v170
    %v175 = vmul.f32 %v152, %v171
    %v176 = vmul.f32 %v155, %v172
    %v177 = vld [vmem:[%s4 + $0x28] sm:$0xff]
    %v178 = vld [vmem:[%s4 + $0x30] sm:$0xff]
    %v179 = vld [vmem:[%s4 + $0x38] sm:$0xff]
    %v180 = vld [vmem:[%s4 + $0x40] sm:$0xff]
    %v181 = vld [vmem:[%s5 + $0x2] sm:$0x1]
    %v182 = vperm.slane %v181, 0
    %v184 = vsel %vm24, %v173, 0
    %v187 = vsel %vm24, %v174, 0
    %v190 = vsel %vm24, %v175, 0
    %v193 = vsel %vm24, %v176, 0
    %195 = vmatpush.msra.mxu0 0.0
    %196 = vmatpush.msra.mxu0 0.0
    %197 = vmatpush.msra.mxu0 0.0
    %198 = vmatpush.msra.mxu0 0.0
    %199 = vmatpush.msra.mxu0 0.0
    %200 = vmatpush.msra.mxu0 0.0
    %201 = vmatpush.msra.mxu0 0.0
    %202 = vmatpush.msra.mxu0 0.0
    %203 = vmatpush.msra.mxu0 0.0
    %204 = vmatpush.msra.mxu0 0.0
    %205 = vmatpush.msra.mxu0 0.0
    %206 = vmatpush.msra.mxu0 0.0
    %207 = vmatpush.msra.mxu0 %v180
    %208 = vmatpush.msra.mxu0 %v179
    %209 = vmatpush.msra.mxu0 %v178
    %210 = vmatpush.msra.mxu0 %v177
    %211 = vmatmul.f32.gmra.mxu0 %v184
    %v212 = vpop.f32.mrf.mxu0
    %v213 = vadd.f32 %v182, %v212
    %214 = vmatmul.f32.gmra.mxu0 %v187
    %v215 = vpop.f32.mrf.mxu0
    %v216 = vadd.f32 %v182, %v215
    %217 = vmatmul.f32.gmra.mxu0 %v190
    %v218 = vpop.f32.mrf.mxu0
    %v219 = vadd.f32 %v182, %v218
    %220 = vmatmul.f32.gmra.mxu0 %v193
    %v221 = vpop.f32.mrf.mxu0
    %v222 = vadd.f32 %v182, %v221
    %223 = vdwg.mxu0
    %v224 = vld [vmem:[%s5 + $0x3] sm:$0x1]
    %v225 = vld [vmem:[%s5 + $0x4] sm:$0x1]
    %v226 = vsel %vm24, %v213, 0.0
    %227 = vadd.xlane.f32.xlu0 %v226
    %v228 = vpop.xlane.xlu0 %227
    %v229 = vsel %vm24, %v216, 0.0
    %230 = vadd.xlane.f32.xlu0 %v229
    %v231 = vpop.xlane.xlu0 %230
    %v232 = vsel %vm24, %v219, 0.0
    %233 = vadd.xlane.f32.xlu0 %v232
    %v234 = vpop.xlane.xlu0 %233
    %v235 = vsel %vm24, %v222, 0.0
    %236 = vadd.xlane.f32.xlu0 %v235
    %v237 = vpop.xlane.xlu0 %236
    %v238 = vrcp.pop 32.0
    %v239 = vmul.f32 32.0, %v238
    %v240 = vsub.f32 1.0, %v239
    %v241 = vmul.f32 %v238, %v240
    %v242 = vadd.f32 %v238, %v241
    %vm243 = vweird.f32 %v238
    %v244 = vsel %vm243, %v238, %v242
    %v245 = vmul.f32 %v228, %v244
    %v246 = vmul.f32 %v231, %v244
    %v247 = vmul.f32 %v234, %v244
    %v248 = vmul.f32 %v237, %v244
    %v249 = vmul.f32 %v213, %v213
    %v250 = vmul.f32 %v216, %v216
    %v251 = vmul.f32 %v219, %v219
    %v252 = vmul.f32 %v222, %v222
    %v253 = vsel %vm24, %v249, 0.0
    %254 = vadd.xlane.f32.xlu0 %v253
    %v255 = vpop.xlane.xlu0 %254
    %v256 = vsel %vm24, %v250, 0.0
    %257 = vadd.xlane.f32.xlu0 %v256
    %v258 = vpop.xlane.xlu0 %257
    %v259 = vsel %vm24, %v251, 0.0
    %260 = vadd.xlane.f32.xlu0 %v259
    %v261 = vpop.xlane.xlu0 %260
    %v262 = vsel %vm24, %v252, 0.0
    %263 = vadd.xlane.f32.xlu0 %v262
    %v264 = vpop.xlane.xlu0 %263
    %v265 = vmul.f32 %v255, %v244
    %v266 = vmul.f32 %v258, %v244
    %v267 = vmul.f32 %v261, %v244
    %v268 = vmul.f32 %v264, %v244
    %v269 = vmul.f32 %v245, %v245
    %v270 = vmul.f32 %v246, %v246
    %v271 = vmul.f32 %v247, %v247
    %v272 = vmul.f32 %v248, %v248
    %v273 = vsub.f32 %v265, %v269
    %v274 = vsub.f32 %v266, %v270
    %v275 = vsub.f32 %v267, %v271
    %v276 = vsub.f32 %v268, %v272
    %v277 = vsub.f32 %v213, %v245
    %v278 = vsub.f32 %v216, %v246
    %v279 = vsub.f32 %v219, %v247
    %v280 = vsub.f32 %v222, %v248
    %v281 = vadd.f32 %v273, 1e-05
    %v282 = vadd.f32 %v274, 1e-05
    %v283 = vadd.f32 %v275, 1e-05
    %v284 = vadd.f32 %v276, 1e-05
    %v285 = vrsqrt.pop %v281
    %v286 = vmul.f32 %v285, %v281
    %v287 = vmul.f32 %v286, %v285
    %v288 = vmul.f32 0.5, %v287
    %v289 = vsub.f32 1.5, %v288
    %v290 = vmul.f32 %v285, %v289
    %vm291 = vweird.f32 %v281
    %vm292 = vweird.f32 %v285
    %vm293 = vmor %vm291, %vm292
    %v294 = vsel %vm293, %v285, %v290
    %v295 = vrsqrt.pop %v282
    %v296 = vmul.f32 %v295, %v282
    %v297 = vmul.f32 %v296, %v295
    %v298 = vmul.f32 0.5, %v297
    %v299 = vsub.f32 1.5, %v298
    %v300 = vmul.f32 %v295, %v299
    %vm301 = vweird.f32 %v282
    %vm302 = vweird.f32 %v295
    %vm303 = vmor %vm301, %vm302
    %v304 = vsel %vm303, %v295, %v300
    %v305 = vrsqrt.pop %v283
    %v306 = vmul.f32 %v305, %v283
    %v307 = vmul.f32 %v306, %v305
    %v308 = vmul.f32 0.5, %v307
    %v309 = vsub.f32 1.5, %v308
    %v310 = vmul.f32 %v305, %v309
    %vm311 = vweird.f32 %v283
    %vm312 = vweird.f32 %v305
    %vm313 = vmor %vm311, %vm312
    %v314 = vsel %vm313, %v305, %v310
    %v315 = vrsqrt.pop %v284
    %v316 = vmul.f32 %v315, %v284
    %v317 = vmul.f32 %v316, %v315
    %v318 = vmul.f32 0.5, %v317
    %v319 = vsub.f32 1.5, %v318
    %v320 = vmul.f32 %v315, %v319
    %vm321 = vweird.f32 %v284
    %vm322 = vweird.f32 %v315
    %vm323 = vmor %vm321, %vm322
    %v324 = vsel %vm323, %v315, %v320
    %v325 = vmul.f32 %v277, %v294
    %v326 = vmul.f32 %v278, %v304
    %v327 = vmul.f32 %v279, %v314
    %v328 = vmul.f32 %v280, %v324
    %v329 = vperm.slane %v224, 0
    %v330 = vmul.f32 %v325, %v329
    %v331 = vmul.f32 %v326, %v329
    %v332 = vmul.f32 %v327, %v329
    %v333 = vmul.f32 %v328, %v329
    %v334 = vperm.slane %v225, 0
    %v335 = vadd.f32 %v330, %v334
    %v336 = vadd.f32 %v331, %v334
    %v337 = vadd.f32 %v332, %v334
    %v338 = vadd.f32 %v333, %v334
    %v339 = vld [vmem:[%s4 + $0x88] sm:$0xff]
    %v340 = vld [vmem:[%s4 + $0x90] sm:$0xff]
    %v341 = vld [vmem:[%s4 + $0x98] sm:$0xff]
    %v342 = vld [vmem:[%s4 + $0xa0] sm:$0xff]
    %v344 = vsel %vm24, %v335, 0
    %v347 = vsel %vm24, %v336, 0
    %v350 = vsel %vm24, %v337, 0
    %v353 = vsel %vm24, %v338, 0
    %355 = vmatpush.msra.mxu0 0.0
    %356 = vmatpush.msra.mxu0 0.0
    %357 = vmatpush.msra.mxu0 0.0
    %358 = vmatpush.msra.mxu0 0.0
    %359 = vmatpush.msra.mxu0 0.0
    %360 = vmatpush.msra.mxu0 0.0
    %361 = vmatpush.msra.mxu0 0.0
    %362 = vmatpush.msra.mxu0 0.0
    %363 = vmatpush.msra.mxu0 0.0
    %364 = vmatpush.msra.mxu0 0.0
    %365 = vmatpush.msra.mxu0 0.0
    %366 = vmatpush.msra.mxu0 0.0
    %367 = vmatpush.msra.mxu0 %v342
    %368 = vmatpush.msra.mxu0 %v341
    %369 = vmatpush.msra.mxu0 %v340
    %370 = vmatpush.msra.mxu0 %v339
    %371 = vmatmul.f32.gmra.mxu0 %v344
    %v372 = vpop.f32.mrf.mxu0
    %v373 = vadd.f32 0.0, %v372
    %374 = vmatmul.f32.gmra.mxu0 %v347
    %v375 = vpop.f32.mrf.mxu0
    %v376 = vadd.f32 0.0, %v375
    %377 = vmatmul.f32.gmra.mxu0 %v350
    %v378 = vpop.f32.mrf.mxu0
    %v379 = vadd.f32 0.0, %v378
    %380 = vmatmul.f32.gmra.mxu0 %v353
    %v381 = vpop.f32.mrf.mxu0
    %v382 = vadd.f32 0.0, %v381
    %383 = vdwg.mxu0
    %v384 = vld [vmem:[%s2] sm:$0xff]
    %v385 = vld [vmem:[%s2 + $0x8] sm:$0xff]
    %v386 = vld [vmem:[%s2 + $0x10] sm:$0xff]
    %v387 = vld [vmem:[%s2 + $0x18] sm:$0xff]
    %v388 = vld [vmem:[%s2 + $0x20] sm:$0xff]
    %v389 = vld [vmem:[%s2 + $0x28] sm:$0xff]
    %v390 = vld [vmem:[%s2 + $0x30] sm:$0xff]
    %v391 = vld [vmem:[%s2 + $0x38] sm:$0xff]
    %v392 = vld [vmem:[%s2 + $0x40] sm:$0xff]
    %v393 = vld [vmem:[%s2 + $0x48] sm:$0xff]
    %v394 = vld [vmem:[%s2 + $0x50] sm:$0xff]
    %v395 = vld [vmem:[%s2 + $0x58] sm:$0xff]
    %v396 = vld [vmem:[%s2 + $0x60] sm:$0xff]
    %v397 = vld [vmem:[%s2 + $0x68] sm:$0xff]
    %v398 = vld [vmem:[%s2 + $0x70] sm:$0xff]
    %v399 = vld [vmem:[%s2 + $0x78] sm:$0xff]
    %v400 = vlaneseq
    %v401 = vand.u32 %v400, 127
    %402 = vset.pattern.permute.xlu0 0
    %403 = vperm.xlu0 %402, %v384
    %v404 = vpop.permute.xlu0 %403
    %405 = vset.pattern.permute.xlu0 0
    %406 = vperm.xlu0 %405, %v385
    %v407 = vpop.permute.xlu0 %406
    %408 = vset.pattern.permute.xlu0 0
    %409 = vperm.xlu0 %408, %v386
    %v410 = vpop.permute.xlu0 %409
    %411 = vset.pattern.permute.xlu0 0
    %412 = vperm.xlu0 %411, %v387
    %v413 = vpop.permute.xlu0 %412
    %414 = vset.pattern.permute.xlu0 0
    %415 = vperm.xlu0 %414, %v388
    %v416 = vpop.permute.xlu0 %415
    %417 = vset.pattern.permute.xlu0 0
    %418 = vperm.xlu0 %417, %v389
    %v419 = vpop.permute.xlu0 %418
    %420 = vset.pattern.permute.xlu0 0
    %421 = vperm.xlu0 %420, %v390
    %v422 = vpop.permute.xlu0 %421
    %423 = vset.pattern.permute.xlu0 0
    %424 = vperm.xlu0 %423, %v391
    %v425 = vpop.permute.xlu0 %424
    %426 = vset.pattern.permute.xlu0 0
    %427 = vperm.xlu0 %426, %v392
    %v428 = vpop.permute.xlu0 %427
    %429 = vset.pattern.permute.xlu0 0
    %430 = vperm.xlu0 %429, %v393
    %v431 = vpop.permute.xlu0 %430
    %432 = vset.pattern.permute.xlu0 0
    %433 = vperm.xlu0 %432, %v394
    %v434 = vpop.permute.xlu0 %433
    %435 = vset.pattern.permute.xlu0 0
    %436 = vperm.xlu0 %435, %v395
    %v437 = vpop.permute.xlu0 %436
    %438 = vset.pattern.permute.xlu0 0
    %439 = vperm.xlu0 %438, %v396
    %v440 = vpop.permute.xlu0 %439
    %441 = vset.pattern.permute.xlu0 0
    %442 = vperm.xlu0 %441, %v397
    %v443 = vpop.permute.xlu0 %442
    %444 = vset.pattern.permute.xlu0 0
    %445 = vperm.xlu0 %444, %v398
    %v446 = vpop.permute.xlu0 %445
    %447 = vset.pattern.permute.xlu0 0
    %448 = vperm.xlu0 %447, %v399
    %v449 = vpop.permute.xlu0 %448
    %vm450 = vcmp.eq.s32.totalorder %v401, %v404
    %vm451 = vcmp.eq.s32.totalorder %v401, %v407
    %vm452 = vcmp.eq.s32.totalorder %v401, %v410
    %vm453 = vcmp.eq.s32.totalorder %v401, %v413
    %vm454 = vcmp.eq.s32.totalorder %v401, %v416
    %vm455 = vcmp.eq.s32.totalorder %v401, %v419
    %vm456 = vcmp.eq.s32.totalorder %v401, %v422
    %vm457 = vcmp.eq.s32.totalorder %v401, %v425
    %vm458 = vcmp.eq.s32.totalorder %v401, %v428
    %vm459 = vcmp.eq.s32.totalorder %v401, %v431
    %vm460 = vcmp.eq.s32.totalorder %v401, %v434
    %vm461 = vcmp.eq.s32.totalorder %v401, %v437
    %vm462 = vcmp.eq.s32.totalorder %v401, %v440
    %vm463 = vcmp.eq.s32.totalorder %v401, %v443
    %vm464 = vcmp.eq.s32.totalorder %v401, %v446
    %vm465 = vcmp.eq.s32.totalorder %v401, %v449
    %v466 = vsel %vm450, 1, 0
    %v467 = vsel %vm451, 1, 0
    %v468 = vsel %vm452, 1, 0
    %v469 = vsel %vm453, 1, 0
    %v470 = vsel %vm454, 1, 0
    %v471 = vsel %vm455, 1, 0
    %v472 = vsel %vm456, 1, 0
    %v473 = vsel %vm457, 1, 0
    %v474 = vsel %vm458, 1, 0
    %v475 = vsel %vm459, 1, 0
    %v476 = vsel %vm460, 1, 0
    %v477 = vsel %vm461, 1, 0
    %v478 = vsel %vm462, 1, 0
    %v479 = vsel %vm463, 1, 0
    %v480 = vsel %vm464, 1, 0
    %v481 = vsel %vm465, 1, 0
    %v482 = vcvt.s32.f32 %v466
    %v483 = vcvt.s32.f32 %v467
    %v484 = vcvt.s32.f32 %v468
    %v485 = vcvt.s32.f32 %v469
    %v486 = vcvt.s32.f32 %v470
    %v487 = vcvt.s32.f32 %v471
    %v488 = vcvt.s32.f32 %v472
    %v489 = vcvt.s32.f32 %v473
    %v490 = vcvt.s32.f32 %v474
    %v491 = vcvt.s32.f32 %v475
    %v492 = vcvt.s32.f32 %v476
    %v493 = vcvt.s32.f32 %v477
    %v494 = vcvt.s32.f32 %v478
    %v495 = vcvt.s32.f32 %v479
    %v496 = vcvt.s32.f32 %v480
    %v497 = vcvt.s32.f32 %v481
    %vm498 = vcmask 392192
    %v500 = vsel %vm498, %v482, 0
    %v503 = vsel %vm498, %v483, 0
    %v506 = vsel %vm498, %v484, 0
    %v509 = vsel %vm498, %v485, 0
    %v512 = vsel %vm498, %v486, 0
    %v515 = vsel %vm498, %v487, 0
    %v518 = vsel %vm498, %v488, 0
    %v521 = vsel %vm498, %v489, 0
    %v524 = vsel %vm498, %v490, 0
    %v527 = vsel %vm498, %v491, 0
    %v530 = vsel %vm498, %v492, 0
    %v533 = vsel %vm498, %v493, 0
    %v536 = vsel %vm498, %v494, 0
    %v539 = vsel %vm498, %v495, 0
    %v542 = vsel %vm498, %v496, 0
    %v545 = vsel %vm498, %v497, 0
    %547 = vmatpush.msra.mxu0 0.0
    %548 = vmatpush.msra.mxu0 0.0
    %549 = vmatpush.msra.mxu0 0.0
    %550 = vmatpush.msra.mxu0 0.0
    %551 = vmatpush.msra.mxu0 0.0
    %552 = vmatpush.msra.mxu0 0.0
    %553 = vmatpush.msra.mxu0 0.0
    %554 = vmatpush.msra.mxu0 0.0
    %555 = vmatpush.msra.mxu0 0.0
    %556 = vmatpush.msra.mxu0 0.0
    %557 = vmatpush.msra.mxu0 %v40
    %558 = vmatpush.msra.mxu0 %v39
    %559 = vmatpush.msra.mxu0 %v38
    %560 = vmatpush.msra.mxu0 %v37
    %561 = vmatpush.msra.mxu0 %v36
    %562 = vmatpush.msra.mxu0 %v35
    %563 = vmatmul.f32.gmra.mxu0 %v500
    %v564 = vpop.f32.mrf.mxu0
    %v565 = vadd.f32 0.0, %v564
    %566 = vmatmul.f32.gmra.mxu0 %v503
    %v567 = vpop.f32.mrf.mxu0
    %v568 = vadd.f32 0.0, %v567
    %569 = vmatmul.f32.gmra.mxu0 %v506
    %v570 = vpop.f32.mrf.mxu0
    %v571 = vadd.f32 0.0, %v570
    %572 = vmatmul.f32.gmra.mxu0 %v509
    %v573 = vpop.f32.mrf.mxu0
    %v574 = vadd.f32 0.0, %v573
    %575 = vmatmul.f32.gmra.mxu0 %v512
    %v576 = vpop.f32.mrf.mxu0
    %v577 = vadd.f32 0.0, %v576
    %578 = vmatmul.f32.gmra.mxu0 %v515
    %v579 = vpop.f32.mrf.mxu0
    %v580 = vadd.f32 0.0, %v579
    %581 = vmatmul.f32.gmra.mxu0 %v518
    %v582 = vpop.f32.mrf.mxu0
    %v583 = vadd.f32 0.0, %v582
    %584 = vmatmul.f32.gmra.mxu0 %v521
    %v585 = vpop.f32.mrf.mxu0
    %v586 = vadd.f32 0.0, %v585
    %587 = vmatmul.f32.gmra.mxu0 %v524
    %v588 = vpop.f32.mrf.mxu0
    %v589 = vadd.f32 0.0, %v588
    %590 = vmatmul.f32.gmra.mxu0 %v527
    %v591 = vpop.f32.mrf.mxu0
    %v592 = vadd.f32 0.0, %v591
    %593 = vmatmul.f32.gmra.mxu0 %v530
    %v594 = vpop.f32.mrf.mxu0
    %v595 = vadd.f32 0.0, %v594
    %596 = vmatmul.f32.gmra.mxu0 %v533
    %v597 = vpop.f32.mrf.mxu0
    %v598 = vadd.f32 0.0, %v597
    %599 = vmatmul.f32.gmra.mxu0 %v536
    %v600 = vpop.f32.mrf.mxu0
    %v601 = vadd.f32 0.0, %v600
    %602 = vmatmul.f32.gmra.mxu0 %v539
    %v603 = vpop.f32.mrf.mxu0
    %v604 = vadd.f32 0.0, %v603
    %605 = vmatmul.f32.gmra.mxu0 %v542
    %v606 = vpop.f32.mrf.mxu0
    %v607 = vadd.f32 0.0, %v606
    %608 = vmatmul.f32.gmra.mxu0 %v545
    %v609 = vpop.f32.mrf.mxu0
    %v610 = vadd.f32 0.0, %v609
    %611 = vdwg.mxu0
    %v612 = vld [vmem:[%s4 + $0x48] sm:$0xff]
    %v613 = vld [vmem:[%s4 + $0x50] sm:$0xff]
    %v614 = vld [vmem:[%s4 + $0x58] sm:$0xff]
    %v615 = vld [vmem:[%s4 + $0x60] sm:$0xff]
    %v616 = vld [vmem:[%s4 + $0x68] sm:$0xff]
    %v617 = vld [vmem:[%s4 + $0x70] sm:$0xff]
    %v618 = vld [vmem:[%s4 + $0x78] sm:$0xff]
    %v619 = vld [vmem:[%s4 + $0x80] sm:$0xff]
    %v621 = vsel %vm24, %v589, 0
    %v624 = vsel %vm24, %v592, 0
    %v627 = vsel %vm24, %v595, 0
    %v630 = vsel %vm24, %v598, 0
    %v633 = vsel %vm24, %v601, 0
    %v636 = vsel %vm24, %v604, 0
    %v639 = vsel %vm24, %v607, 0
    %v642 = vsel %vm24, %v610, 0
    %644 = vmatpush.msra.mxu0 0.0
    %645 = vmatpush.msra.mxu0 0.0
    %646 = vmatpush.msra.mxu0 0.0
    %647 = vmatpush.msra.mxu0 0.0
    %648 = vmatpush.msra.mxu0 0.0
    %649 = vmatpush.msra.mxu0 0.0
    %650 = vmatpush.msra.mxu0 0.0
    %651 = vmatpush.msra.mxu0 0.0
    %652 = vmatpush.msra.mxu0 0.0
    %653 = vmatpush.msra.mxu0 0.0
    %654 = vmatpush.msra.mxu0 0.0
    %655 = vmatpush.msra.mxu0 0.0
    %656 = vmatpush.msra.mxu0 %v619
    %657 = vmatpush.msra.mxu0 %v618
    %658 = vmatpush.msra.mxu0 %v617
    %659 = vmatpush.msra.mxu0 %v616
    %660 = vmatmul.f32.gmra.mxu0 %v621
    %v661 = vpop.f32.mrf.mxu0
    %v662 = vadd.f32 0.0, %v661
    %663 = vmatmul.f32.gmra.mxu0 %v624
    %v664 = vpop.f32.mrf.mxu0
    %v665 = vadd.f32 0.0, %v664
    %666 = vmatmul.f32.gmra.mxu0 %v627
    %v667 = vpop.f32.mrf.mxu0
    %v668 = vadd.f32 0.0, %v667
    %669 = vmatmul.f32.gmra.mxu0 %v630
    %v670 = vpop.f32.mrf.mxu0
    %v671 = vadd.f32 0.0, %v670
    %672 = vmatmul.f32.gmra.mxu0 %v633
    %v673 = vpop.f32.mrf.mxu0
    %v674 = vadd.f32 0.0, %v673
    %675 = vmatmul.f32.gmra.mxu0 %v636
    %v676 = vpop.f32.mrf.mxu0
    %v677 = vadd.f32 0.0, %v676
    %678 = vmatmul.f32.gmra.mxu0 %v639
    %v679 = vpop.f32.mrf.mxu0
    %v680 = vadd.f32 0.0, %v679
    %681 = vmatmul.f32.gmra.mxu0 %v642
    %v682 = vpop.f32.mrf.mxu0
    %v683 = vadd.f32 0.0, %v682
    %684 = vdwg.mxu0
    %v686 = vsel %vm24, %v565, 0
    %v689 = vsel %vm24, %v568, 0
    %v692 = vsel %vm24, %v571, 0
    %v695 = vsel %vm24, %v574, 0
    %v698 = vsel %vm24, %v577, 0
    %v701 = vsel %vm24, %v580, 0
    %v704 = vsel %vm24, %v583, 0
    %v707 = vsel %vm24, %v586, 0
    %709 = vmatpush.msra.mxu0 0.0
    %710 = vmatpush.msra.mxu0 0.0
    %711 = vmatpush.msra.mxu0 0.0
    %712 = vmatpush.msra.mxu0 0.0
    %713 = vmatpush.msra.mxu0 0.0
    %714 = vmatpush.msra.mxu0 0.0
    %715 = vmatpush.msra.mxu0 0.0
    %716 = vmatpush.msra.mxu0 0.0
    %717 = vmatpush.msra.mxu0 0.0
    %718 = vmatpush.msra.mxu0 0.0
    %719 = vmatpush.msra.mxu0 0.0
    %720 = vmatpush.msra.mxu0 0.0
    %721 = vmatpush.msra.mxu0 %v615
    %722 = vmatpush.msra.mxu0 %v614
    %723 = vmatpush.msra.mxu0 %v613
    %724 = vmatpush.msra.mxu0 %v612
    %725 = vmatmul.f32.gmra.mxu0 %v686
    %v726 = vpop.f32.mrf.mxu0
    %v727 = vadd.f32 %v662, %v726
    %728 = vmatmul.f32.gmra.mxu0 %v689
    %v729 = vpop.f32.mrf.mxu0
    %v730 = vadd.f32 %v665, %v729
    %731 = vmatmul.f32.gmra.mxu0 %v692
    %v732 = vpop.f32.mrf.mxu0
    %v733 = vadd.f32 %v668, %v732
    %734 = vmatmul.f32.gmra.mxu0 %v695
    %v735 = vpop.f32.mrf.mxu0
    %v736 = vadd.f32 %v671, %v735
    %737 = vmatmul.f32.gmra.mxu0 %v698
    %v738 = vpop.f32.mrf.mxu0
    %v739 = vadd.f32 %v674, %v738
    %740 = vmatmul.f32.gmra.mxu0 %v701
    %v741 = vpop.f32.mrf.mxu0
    %v742 = vadd.f32 %v677, %v741
    %743 = vmatmul.f32.gmra.mxu0 %v704
    %v744 = vpop.f32.mrf.mxu0
    %v745 = vadd.f32 %v680, %v744
    %746 = vmatmul.f32.gmra.mxu0 %v707
    %v747 = vpop.f32.mrf.mxu0
    %v748 = vadd.f32 %v683, %v747
    %749 = vdwg.mxu0
    %v750 = vadd.f32 %v727, %v373
    %v751 = vadd.f32 %v730, %v376
    %v752 = vadd.f32 %v733, %v379
    %v753 = vadd.f32 %v736, %v382
    %v754 = vadd.f32 %v739, %v373
    %v755 = vadd.f32 %v742, %v376
    %v756 = vadd.f32 %v745, %v379
    %v757 = vadd.f32 %v748, %v382
    %v758 = vld [vmem:[%s5 + $0x5] sm:$0x1]
    %v759 = vperm.slane %v758, 0
    %v760 = vadd.f32 %v750, %v759
    %v761 = vadd.f32 %v751, %v759
    %v762 = vadd.f32 %v752, %v759
    %v763 = vadd.f32 %v753, %v759
    %v764 = vadd.f32 %v754, %v759
    %v765 = vadd.f32 %v755, %v759
    %v766 = vadd.f32 %v756, %v759
    %v767 = vadd.f32 %v757, %v759
    %v768 = vmul.f32 %v760, 0.5
    %v769 = vmul.f32 %v761, 0.5
    %v770 = vmul.f32 %v762, 0.5
    %v771 = vmul.f32 %v763, 0.5
    %v772 = vmul.f32 %v764, 0.5
    %v773 = vmul.f32 %v765, 0.5
    %v774 = vmul.f32 %v766, 0.5
    %v775 = vmul.f32 %v767, 0.5
    %v776 = vtanh.pop %v768
    %v777 = vtanh.pop %v769
    %v778 = vtanh.pop %v770
    %v779 = vtanh.pop %v771
    %v780 = vtanh.pop %v772
    %v781 = vtanh.pop %v773
    %v782 = vtanh.pop %v774
    %v783 = vtanh.pop %v775
    %v784 = vadd.f32 %v776, 1.0
    %v785 = vadd.f32 %v777, 1.0
    %v786 = vadd.f32 %v778, 1.0
    %v787 = vadd.f32 %v779, 1.0
    %v788 = vadd.f32 %v780, 1.0
    %v789 = vadd.f32 %v781, 1.0
    %v790 = vadd.f32 %v782, 1.0
    %v791 = vadd.f32 %v783, 1.0
    %v792 = vmul.f32 %v784, 0.5
    %v793 = vmul.f32 %v785, 0.5
    %v794 = vmul.f32 %v786, 0.5
    %v795 = vmul.f32 %v787, 0.5
    %v796 = vmul.f32 %v788, 0.5
    %v797 = vmul.f32 %v789, 0.5
    %v798 = vmul.f32 %v790, 0.5
    %v799 = vmul.f32 %v791, 0.5
    %v800 = vmul.f32 %v760, %v792
    %v801 = vmul.f32 %v761, %v793
    %v802 = vmul.f32 %v762, %v794
    %v803 = vmul.f32 %v763, %v795
    %v804 = vmul.f32 %v764, %v796
    %v805 = vmul.f32 %v765, %v797
    %v806 = vmul.f32 %v766, %v798
    %v807 = vmul.f32 %v767, %v799
    %v808 = vld [vmem:[%s4 + $0xa8] sm:$0xff]
    %v809 = vld [vmem:[%s4 + $0xb0] sm:$0xff]
    %v810 = vld [vmem:[%s4 + $0xb8] sm:$0xff]
    %v811 = vld [vmem:[%s4 + $0xc0] sm:$0xff]
    %v812 = vld [vmem:[%s5 + $0x6] sm:$0x1]
    %v813 = vperm.slane %v812, 0
    %v815 = vsel %vm24, %v800, 0
    %v818 = vsel %vm24, %v801, 0
    %v821 = vsel %vm24, %v802, 0
    %v824 = vsel %vm24, %v803, 0
    %v827 = vsel %vm24, %v804, 0
    %v830 = vsel %vm24, %v805, 0
    %v833 = vsel %vm24, %v806, 0
    %v836 = vsel %vm24, %v807, 0
    %838 = vmatpush.msra.mxu0 0.0
    %839 = vmatpush.msra.mxu0 0.0
    %840 = vmatpush.msra.mxu0 0.0
    %841 = vmatpush.msra.mxu0 0.0
    %842 = vmatpush.msra.mxu0 0.0
    %843 = vmatpush.msra.mxu0 0.0
    %844 = vmatpush.msra.mxu0 0.0
    %845 = vmatpush.msra.mxu0 0.0
    %846 = vmatpush.msra.mxu0 0.0
    %847 = vmatpush.msra.mxu0 0.0
    %848 = vmatpush.msra.mxu0 0.0
    %849 = vmatpush.msra.mxu0 0.0
    %850 = vmatpush.msra.mxu0 %v811
    %851 = vmatpush.msra.mxu0 %v810
    %852 = vmatpush.msra.mxu0 %v809
    %853 = vmatpush.msra.mxu0 %v808
    %854 = vmatmul.f32.gmra.mxu0 %v815
    %v855 = vpop.f32.mrf.mxu0
    %v856 = vadd.f32 %v813, %v855
    %857 = vmatmul.f32.gmra.mxu0 %v818
    %v858 = vpop.f32.mrf.mxu0
    %v859 = vadd.f32 %v813, %v858
    %860 = vmatmul.f32.gmra.mxu0 %v821
    %v861 = vpop.f32.mrf.mxu0
    %v862 = vadd.f32 %v813, %v861
    %863 = vmatmul.f32.gmra.mxu0 %v824
    %v864 = vpop.f32.mrf.mxu0
    %v865 = vadd.f32 %v813, %v864
    %866 = vmatmul.f32.gmra.mxu0 %v827
    %v867 = vpop.f32.mrf.mxu0
    %v868 = vadd.f32 %v813, %v867
    %869 = vmatmul.f32.gmra.mxu0 %v830
    %v870 = vpop.f32.mrf.mxu0
    %v871 = vadd.f32 %v813, %v870
    %872 = vmatmul.f32.gmra.mxu0 %v833
    %v873 = vpop.f32.mrf.mxu0
    %v874 = vadd.f32 %v813, %v873
    %875 = vmatmul.f32.gmra.mxu0 %v836
    %v876 = vpop.f32.mrf.mxu0
    %v877 = vadd.f32 %v813, %v876
    %878 = vdwg.mxu0
    %v879 = vmul.f32 %v856, 0.5
    %v880 = vmul.f32 %v859, 0.5
    %v881 = vmul.f32 %v862, 0.5
    %v882 = vmul.f32 %v865, 0.5
    %v883 = vmul.f32 %v868, 0.5
    %v884 = vmul.f32 %v871, 0.5
    %v885 = vmul.f32 %v874, 0.5
    %v886 = vmul.f32 %v877, 0.5
    %v887 = vtanh.pop %v879
    %v888 = vtanh.pop %v880
    %v889 = vtanh.pop %v881
    %v890 = vtanh.pop %v882
    %v891 = vtanh.pop %v883
    %v892 = vtanh.pop %v884
    %v893 = vtanh.pop %v885
    %v894 = vtanh.pop %v886
    %v895 = vadd.f32 %v887, 1.0
    %v896 = vadd.f32 %v888, 1.0
    %v897 = vadd.f32 %v889, 1.0
    %v898 = vadd.f32 %v890, 1.0
    %v899 = vadd.f32 %v891, 1.0
    %v900 = vadd.f32 %v892, 1.0
    %v901 = vadd.f32 %v893, 1.0
    %v902 = vadd.f32 %v894, 1.0
    %v903 = vmul.f32 %v895, 0.5
    %v904 = vmul.f32 %v896, 0.5
    %v905 = vmul.f32 %v897, 0.5
    %v906 = vmul.f32 %v898, 0.5
    %v907 = vmul.f32 %v899, 0.5
    %v908 = vmul.f32 %v900, 0.5
    %v909 = vmul.f32 %v901, 0.5
    %v910 = vmul.f32 %v902, 0.5
    %v911 = vmul.f32 %v856, %v903
    %v912 = vmul.f32 %v859, %v904
    %v913 = vmul.f32 %v862, %v905
    %v914 = vmul.f32 %v865, %v906
    %v915 = vmul.f32 %v868, %v907
    %v916 = vmul.f32 %v871, %v908
    %v917 = vmul.f32 %v874, %v909
    %v918 = vmul.f32 %v877, %v910
    %v919 = vld [vmem:[%s4 + $0xc8] sm:$0xff]
    %v920 = vld [vmem:[%s4 + $0xd0] sm:$0xff]
    %v921 = vld [vmem:[%s4 + $0xd8] sm:$0xff]
    %v922 = vld [vmem:[%s4 + $0xe0] sm:$0xff]
    %v923 = vld [vmem:[%s5 + $0x7] sm:$0x1]
    %v924 = vperm.slane %v923, 0
    %v926 = vsel %vm24, %v911, 0
    %v929 = vsel %vm24, %v912, 0
    %v932 = vsel %vm24, %v913, 0
    %v935 = vsel %vm24, %v914, 0
    %v938 = vsel %vm24, %v915, 0
    %v941 = vsel %vm24, %v916, 0
    %v944 = vsel %vm24, %v917, 0
    %v947 = vsel %vm24, %v918, 0
    %949 = vmatpush.msra.mxu0 0.0
    %950 = vmatpush.msra.mxu0 0.0
    %951 = vmatpush.msra.mxu0 0.0
    %952 = vmatpush.msra.mxu0 0.0
    %953 = vmatpush.msra.mxu0 0.0
    %954 = vmatpush.msra.mxu0 0.0
    %955 = vmatpush.msra.mxu0 0.0
    %956 = vmatpush.msra.mxu0 0.0
    %957 = vmatpush.msra.mxu0 0.0
    %958 = vmatpush.msra.mxu0 0.0
    %959 = vmatpush.msra.mxu0 0.0
    %960 = vmatpush.msra.mxu0 0.0
    %961 = vmatpush.msra.mxu0 %v922
    %962 = vmatpush.msra.mxu0 %v921
    %963 = vmatpush.msra.mxu0 %v920
    %964 = vmatpush.msra.mxu0 %v919
    %965 = vmatmul.f32.gmra.mxu0 %v926
    %v966 = vpop.f32.mrf.mxu0
    %v967 = vadd.f32 %v924, %v966
    %968 = vmatmul.f32.gmra.mxu0 %v929
    %v969 = vpop.f32.mrf.mxu0
    %v970 = vadd.f32 %v924, %v969
    %971 = vmatmul.f32.gmra.mxu0 %v932
    %v972 = vpop.f32.mrf.mxu0
    %v973 = vadd.f32 %v924, %v972
    %974 = vmatmul.f32.gmra.mxu0 %v935
    %v975 = vpop.f32.mrf.mxu0
    %v976 = vadd.f32 %v924, %v975
    %977 = vmatmul.f32.gmra.mxu0 %v938
    %v978 = vpop.f32.mrf.mxu0
    %v979 = vadd.f32 %v924, %v978
    %980 = vmatmul.f32.gmra.mxu0 %v941
    %v981 = vpop.f32.mrf.mxu0
    %v982 = vadd.f32 %v924, %v981
    %983 = vmatmul.f32.gmra.mxu0 %v944
    %v984 = vpop.f32.mrf.mxu0
    %v985 = vadd.f32 %v924, %v984
    %986 = vmatmul.f32.gmra.mxu0 %v947
    %v987 = vpop.f32.mrf.mxu0
    %v988 = vadd.f32 %v924, %v987
    %989 = vdwg.mxu0
    %v990 = vld [vmem:[%s5 + $0x8] sm:$0x1]
    %v991 = vld [vmem:[%s5 + $0x9] sm:$0x1]
    %v992 = vsel %vm24, %v967, 0.0
    %993 = vadd.xlane.f32.xlu0 %v992
    %v994 = vpop.xlane.xlu0 %993
    %v995 = vsel %vm24, %v970, 0.0
    %996 = vadd.xlane.f32.xlu0 %v995
    %v997 = vpop.xlane.xlu0 %996
    %v998 = vsel %vm24, %v973, 0.0
    %999 = vadd.xlane.f32.xlu0 %v998
    %v1000 = vpop.xlane.xlu0 %999
    %v1001 = vsel %vm24, %v976, 0.0
    %1002 = vadd.xlane.f32.xlu0 %v1001
    %v1003 = vpop.xlane.xlu0 %1002
    %v1004 = vsel %vm24, %v979, 0.0
    %1005 = vadd.xlane.f32.xlu0 %v1004
    %v1006 = vpop.xlane.xlu0 %1005
    %v1007 = vsel %vm24, %v982, 0.0
    %1008 = vadd.xlane.f32.xlu0 %v1007
    %v1009 = vpop.xlane.xlu0 %1008
    %v1010 = vsel %vm24, %v985, 0.0
    %1011 = vadd.xlane.f32.xlu0 %v1010
    %v1012 = vpop.xlane.xlu0 %1011
    %v1013 = vsel %vm24, %v988, 0.0
    %1014 = vadd.xlane.f32.xlu0 %v1013
    %v1015 = vpop.xlane.xlu0 %1014
    %v1016 = vmul.f32 %v994, %v244
    %v1017 = vmul.f32 %v997, %v244
    %v1018 = vmul.f32 %v1000, %v244
    %v1019 = vmul.f32 %v1003, %v244
    %v1020 = vmul.f32 %v1006, %v244
    %v1021 = vmul.f32 %v1009, %v244
    %v1022 = vmul.f32 %v1012, %v244
    %v1023 = vmul.f32 %v1015, %v244
    %v1024 = vmul.f32 %v967, %v967
    %v1025 = vmul.f32 %v970, %v970
    %v1026 = vmul.f32 %v973, %v973
    %v1027 = vmul.f32 %v976, %v976
    %v1028 = vmul.f32 %v979, %v979
    %v1029 = vmul.f32 %v982, %v982
    %v1030 = vmul.f32 %v985, %v985
    %v1031 = vmul.f32 %v988, %v988
    %v1032 = vsel %vm24, %v1024, 0.0
    %1033 = vadd.xlane.f32.xlu0 %v1032
    %v1034 = vpop.xlane.xlu0 %1033
    %v1035 = vsel %vm24, %v1025, 0.0
    %1036 = vadd.xlane.f32.xlu0 %v1035
    %v1037 = vpop.xlane.xlu0 %1036
    %v1038 = vsel %vm24, %v1026, 0.0
    %1039 = vadd.xlane.f32.xlu0 %v1038
    %v1040 = vpop.xlane.xlu0 %1039
    %v1041 = vsel %vm24, %v1027, 0.0
    %1042 = vadd.xlane.f32.xlu0 %v1041
    %v1043 = vpop.xlane.xlu0 %1042
    %v1044 = vsel %vm24, %v1028, 0.0
    %1045 = vadd.xlane.f32.xlu0 %v1044
    %v1046 = vpop.xlane.xlu0 %1045
    %v1047 = vsel %vm24, %v1029, 0.0
    %1048 = vadd.xlane.f32.xlu0 %v1047
    %v1049 = vpop.xlane.xlu0 %1048
    %v1050 = vsel %vm24, %v1030, 0.0
    %1051 = vadd.xlane.f32.xlu0 %v1050
    %v1052 = vpop.xlane.xlu0 %1051
    %v1053 = vsel %vm24, %v1031, 0.0
    %1054 = vadd.xlane.f32.xlu0 %v1053
    %v1055 = vpop.xlane.xlu0 %1054
    %v1056 = vmul.f32 %v1034, %v244
    %v1057 = vmul.f32 %v1037, %v244
    %v1058 = vmul.f32 %v1040, %v244
    %v1059 = vmul.f32 %v1043, %v244
    %v1060 = vmul.f32 %v1046, %v244
    %v1061 = vmul.f32 %v1049, %v244
    %v1062 = vmul.f32 %v1052, %v244
    %v1063 = vmul.f32 %v1055, %v244
    %v1064 = vmul.f32 %v1016, %v1016
    %v1065 = vmul.f32 %v1017, %v1017
    %v1066 = vmul.f32 %v1018, %v1018
    %v1067 = vmul.f32 %v1019, %v1019
    %v1068 = vmul.f32 %v1020, %v1020
    %v1069 = vmul.f32 %v1021, %v1021
    %v1070 = vmul.f32 %v1022, %v1022
    %v1071 = vmul.f32 %v1023, %v1023
    %v1072 = vsub.f32 %v1056, %v1064
    %v1073 = vsub.f32 %v1057, %v1065
    %v1074 = vsub.f32 %v1058, %v1066
    %v1075 = vsub.f32 %v1059, %v1067
    %v1076 = vsub.f32 %v1060, %v1068
    %v1077 = vsub.f32 %v1061, %v1069
    %v1078 = vsub.f32 %v1062, %v1070
    %v1079 = vsub.f32 %v1063, %v1071
    %v1080 = vsub.f32 %v967, %v1016
    %v1081 = vsub.f32 %v970, %v1017
    %v1082 = vsub.f32 %v973, %v1018
    %v1083 = vsub.f32 %v976, %v1019
    %v1084 = vsub.f32 %v979, %v1020
    %v1085 = vsub.f32 %v982, %v1021
    %v1086 = vsub.f32 %v985, %v1022
    %v1087 = vsub.f32 %v988, %v1023
    %v1088 = vadd.f32 %v1072, 1e-05
    %v1089 = vadd.f32 %v1073, 1e-05
    %v1090 = vadd.f32 %v1074, 1e-05
    %v1091 = vadd.f32 %v1075, 1e-05
    %v1092 = vadd.f32 %v1076, 1e-05
    %v1093 = vadd.f32 %v1077, 1e-05
    %v1094 = vadd.f32 %v1078, 1e-05
    %v1095 = vadd.f32 %v1079, 1e-05
    %v1096 = vrsqrt.pop %v1088
    %v1097 = vmul.f32 %v1096, %v1088
    %v1098 = vmul.f32 %v1097, %v1096
    %v1099 = vmul.f32 0.5, %v1098
    %v1100 = vsub.f32 1.5, %v1099
    %v1101 = vmul.f32 %v1096, %v1100
    %vm1102 = vweird.f32 %v1088
    %vm1103 = vweird.f32 %v1096
    %vm1104 = vmor %vm1102, %vm1103
    %v1105 = vsel %vm1104, %v1096, %v1101
    %v1106 = vrsqrt.pop %v1089
    %v1107 = vmul.f32 %v1106, %v1089
    %v1108 = vmul.f32 %v1107, %v1106
    %v1109 = vmul.f32 0.5, %v1108
    %v1110 = vsub.f32 1.5, %v1109
    %v1111 = vmul.f32 %v1106, %v1110
    %vm1112 = vweird.f32 %v1089
    %vm1113 = vweird.f32 %v1106
    %vm1114 = vmor %vm1112, %vm1113
    %v1115 = vsel %vm1114, %v1106, %v1111
    %v1116 = vrsqrt.pop %v1090
    %v1117 = vmul.f32 %v1116, %v1090
    %v1118 = vmul.f32 %v1117, %v1116
    %v1119 = vmul.f32 0.5, %v1118
    %v1120 = vsub.f32 1.5, %v1119
    %v1121 = vmul.f32 %v1116, %v1120
    %vm1122 = vweird.f32 %v1090
    %vm1123 = vweird.f32 %v1116
    %vm1124 = vmor %vm1122, %vm1123
    %v1125 = vsel %vm1124, %v1116, %v1121
    %v1126 = vrsqrt.pop %v1091
    %v1127 = vmul.f32 %v1126, %v1091
    %v1128 = vmul.f32 %v1127, %v1126
    %v1129 = vmul.f32 0.5, %v1128
    %v1130 = vsub.f32 1.5, %v1129
    %v1131 = vmul.f32 %v1126, %v1130
    %vm1132 = vweird.f32 %v1091
    %vm1133 = vweird.f32 %v1126
    %vm1134 = vmor %vm1132, %vm1133
    %v1135 = vsel %vm1134, %v1126, %v1131
    %v1136 = vrsqrt.pop %v1092
    %v1137 = vmul.f32 %v1136, %v1092
    %v1138 = vmul.f32 %v1137, %v1136
    %v1139 = vmul.f32 0.5, %v1138
    %v1140 = vsub.f32 1.5, %v1139
    %v1141 = vmul.f32 %v1136, %v1140
    %vm1142 = vweird.f32 %v1092
    %vm1143 = vweird.f32 %v1136
    %vm1144 = vmor %vm1142, %vm1143
    %v1145 = vsel %vm1144, %v1136, %v1141
    %v1146 = vrsqrt.pop %v1093
    %v1147 = vmul.f32 %v1146, %v1093
    %v1148 = vmul.f32 %v1147, %v1146
    %v1149 = vmul.f32 0.5, %v1148
    %v1150 = vsub.f32 1.5, %v1149
    %v1151 = vmul.f32 %v1146, %v1150
    %vm1152 = vweird.f32 %v1093
    %vm1153 = vweird.f32 %v1146
    %vm1154 = vmor %vm1152, %vm1153
    %v1155 = vsel %vm1154, %v1146, %v1151
    %v1156 = vrsqrt.pop %v1094
    %v1157 = vmul.f32 %v1156, %v1094
    %v1158 = vmul.f32 %v1157, %v1156
    %v1159 = vmul.f32 0.5, %v1158
    %v1160 = vsub.f32 1.5, %v1159
    %v1161 = vmul.f32 %v1156, %v1160
    %vm1162 = vweird.f32 %v1094
    %vm1163 = vweird.f32 %v1156
    %vm1164 = vmor %vm1162, %vm1163
    %v1165 = vsel %vm1164, %v1156, %v1161
    %v1166 = vrsqrt.pop %v1095
    %v1167 = vmul.f32 %v1166, %v1095
    %v1168 = vmul.f32 %v1167, %v1166
    %v1169 = vmul.f32 0.5, %v1168
    %v1170 = vsub.f32 1.5, %v1169
    %v1171 = vmul.f32 %v1166, %v1170
    %vm1172 = vweird.f32 %v1095
    %vm1173 = vweird.f32 %v1166
    %vm1174 = vmor %vm1172, %vm1173
    %v1175 = vsel %vm1174, %v1166, %v1171
    %v1176 = vmul.f32 %v1080, %v1105
    %v1177 = vmul.f32 %v1081, %v1115
    %v1178 = vmul.f32 %v1082, %v1125
    %v1179 = vmul.f32 %v1083, %v1135
    %v1180 = vmul.f32 %v1084, %v1145
    %v1181 = vmul.f32 %v1085, %v1155
    %v1182 = vmul.f32 %v1086, %v1165
    %v1183 = vmul.f32 %v1087, %v1175
    %v1184 = vperm.slane %v990, 0
    %v1185 = vmul.f32 %v1176, %v1184
    %v1186 = vmul.f32 %v1177, %v1184
    %v1187 = vmul.f32 %v1178, %v1184
    %v1188 = vmul.f32 %v1179, %v1184
    %v1189 = vmul.f32 %v1180, %v1184
    %v1190 = vmul.f32 %v1181, %v1184
    %v1191 = vmul.f32 %v1182, %v1184
    %v1192 = vmul.f32 %v1183, %v1184
    %v1193 = vperm.slane %v991, 0
    %v1194 = vadd.f32 %v1185, %v1193
    %v1195 = vadd.f32 %v1186, %v1193
    %v1196 = vadd.f32 %v1187, %v1193
    %v1197 = vadd.f32 %v1188, %v1193
    %v1198 = vadd.f32 %v1189, %v1193
    %v1199 = vadd.f32 %v1190, %v1193
    %v1200 = vadd.f32 %v1191, %v1193
    %v1201 = vadd.f32 %v1192, %v1193
    %v1202 = vadd.f32 %v1194, %v335
    %v1203 = vadd.f32 %v1195, %v336
    %v1204 = vadd.f32 %v1196, %v337
    %v1205 = vadd.f32 %v1197, %v338
    %v1206 = vadd.f32 %v1198, %v335
    %v1207 = vadd.f32 %v1199, %v336
    %v1208 = vadd.f32 %v1200, %v337
    %v1209 = vadd.f32 %v1201, %v338
    %v1210 = vld [vmem:[%s3] sm:$0x1]
    %v1211 = vlaneseq
    %v1212 = vshrl.u32 %v1211, 7
    %v1213 = vadd.s32 %v1212, 8
    %v1214 = vadd.s32 %v1212, 16
    %v1215 = vadd.s32 %v1212, 24
    %v1216 = vadd.s32 %v1212, 32
    %v1217 = vadd.s32 %v1212, 40
    %v1218 = vperm.slane %v1210, 0
    %vm1219 = vcmp.eq.s32.totalorder %v1212, %v1218
    %vm1220 = vcmp.eq.s32.totalorder %v1213, %v1218
    %vm1221 = vcmp.eq.s32.totalorder %v1214, %v1218
    %vm1222 = vcmp.eq.s32.totalorder %v1215, %v1218
    %vm1223 = vcmp.eq.s32.totalorder %v1216, %v1218
    %vm1224 = vcmp.eq.s32.totalorder %v1217, %v1218
    %v1225 = vsel %vm1219, 1, 0
    %v1226 = vsel %vm1220, 1, 0
    %v1227 = vsel %vm1221, 1, 0
    %v1228 = vsel %vm1222, 1, 0
    %v1229 = vsel %vm1223, 1, 0
    %v1230 = vsel %vm1224, 1, 0
    %v1231 = vcvt.s32.f32 %v1225
    %v1232 = vcvt.s32.f32 %v1226
    %v1233 = vcvt.s32.f32 %v1227
    %v1234 = vcvt.s32.f32 %v1228
    %v1235 = vcvt.s32.f32 %v1229
    %v1236 = vcvt.s32.f32 %v1230
    %vm1237 = vcmask 523264
    %v1239 = vsel %vm1237, %v1231, 0
    %v1242 = vsel %vm1237, %v1232, 0
    %v1245 = vsel %vm1237, %v1233, 0
    %v1248 = vsel %vm1237, %v1234, 0
    %v1251 = vsel %vm1237, %v1235, 0
    %v1254 = vsel %vm1237, %v1236, 0
    %1256 = vmatpush.msra.mxu0 0.0
    %1257 = vmatpush.msra.mxu0 0.0
    %1258 = vmatpush.msra.mxu0 0.0
    %1259 = vmatpush.msra.mxu0 0.0
    %1260 = vmatpush.msra.mxu0 0.0
    %1261 = vmatpush.msra.mxu0 0.0
    %1262 = vmatpush.msra.mxu0 0.0
    %1263 = vmatpush.msra.mxu0 0.0
    %1264 = vmatpush.msra.mxu0 %v1209
    %1265 = vmatpush.msra.mxu0 %v1208
    %1266 = vmatpush.msra.mxu0 %v1207
    %1267 = vmatpush.msra.mxu0 %v1206
    %1268 = vmatpush.msra.mxu0 %v1205
    %1269 = vmatpush.msra.mxu0 %v1204
    %1270 = vmatpush.msra.mxu0 %v1203
    %1271 = vmatpush.msra.mxu0 %v1202
    %1272 = vmatmul.f32.gmra.mxu0 %v1239
    %v1273 = vpop.f32.mrf.mxu0
    %v1274 = vadd.f32 0.0, %v1273
    %1275 = vmatmul.f32.gmra.mxu0 %v1242
    %v1276 = vpop.f32.mrf.mxu0
    %v1277 = vadd.f32 0.0, %v1276
    %1278 = vmatmul.f32.gmra.mxu0 %v1245
    %v1279 = vpop.f32.mrf.mxu0
    %v1280 = vadd.f32 0.0, %v1279
    %1281 = vmatmul.f32.gmra.mxu0 %v1248
    %v1282 = vpop.f32.mrf.mxu0
    %v1283 = vadd.f32 0.0, %v1282
    %1284 = vmatmul.f32.gmra.mxu0 %v1251
    %v1285 = vpop.f32.mrf.mxu0
    %v1286 = vadd.f32 0.0, %v1285
    %1287 = vmatmul.f32.gmra.mxu0 %v1254
    %v1288 = vpop.f32.mrf.mxu0
    %v1289 = vadd.f32 0.0, %v1288
    %1290 = vdwg.mxu0
    %v1291 = vld [vmem:[%s4 + $0xe8] sm:$0xff]
    %v1292 = vld [vmem:[%s4 + $0xf0] sm:$0xff]
    %v1293 = vld [vmem:[%s4 + $0xf8] sm:$0xff]
    %v1294 = vld [vmem:[%s4 + $0x100] sm:$0xff]
    %v1295 = vld [vmem:[%s4 + $0x108] sm:$0xff]
    %v1296 = vld [vmem:[%s4 + $0x110] sm:$0xff]
    %v1297 = vld [vmem:[%s4 + $0x118] sm:$0xff]
    %v1298 = vld [vmem:[%s4 + $0x120] sm:$0xff]
    %v1300 = vsel %vm24, %v1274, 0
    %v1303 = vsel %vm24, %v1277, 0
    %v1306 = vsel %vm24, %v1280, 0
    %v1309 = vsel %vm24, %v1283, 0
    %v1312 = vsel %vm24, %v1286, 0
    %v1315 = vsel %vm24, %v1289, 0
    %1317 = vmatpush.msra.mxu0 0.0
    %1318 = vmatpush.msra.mxu0 0.0
    %1319 = vmatpush.msra.mxu0 0.0
    %1320 = vmatpush.msra.mxu0 0.0
    %1321 = vmatpush.msra.mxu0 0.0
    %1322 = vmatpush.msra.mxu0 0.0
    %1323 = vmatpush.msra.mxu0 0.0
    %1324 = vmatpush.msra.mxu0 0.0
    %1325 = vmatpush.msra.mxu0 0.0
    %1326 = vmatpush.msra.mxu0 0.0
    %1327 = vmatpush.msra.mxu0 0.0
    %1328 = vmatpush.msra.mxu0 0.0
    %1329 = vmatpush.msra.mxu0 %v1298
    %1330 = vmatpush.msra.mxu0 %v1297
    %1331 = vmatpush.msra.mxu0 %v1296
    %1332 = vmatpush.msra.mxu0 %v1295
    %1333 = vmatmul.f32.gmra.mxu0 %v1300
    %v1334 = vpop.f32.mrf.mxu0
    %v1335 = vadd.f32 0.0, %v1334
    %1336 = vmatmul.f32.gmra.mxu0 %v1303
    %v1337 = vpop.f32.mrf.mxu0
    %v1338 = vadd.f32 0.0, %v1337
    %1339 = vmatmul.f32.gmra.mxu0 %v1306
    %v1340 = vpop.f32.mrf.mxu0
    %v1341 = vadd.f32 0.0, %v1340
    %1342 = vmatmul.f32.gmra.mxu0 %v1309
    %v1343 = vpop.f32.mrf.mxu0
    %v1344 = vadd.f32 0.0, %v1343
    %1345 = vmatmul.f32.gmra.mxu0 %v1312
    %v1346 = vpop.f32.mrf.mxu0
    %v1347 = vadd.f32 0.0, %v1346
    %1348 = vmatmul.f32.gmra.mxu0 %v1315
    %v1349 = vpop.f32.mrf.mxu0
    %v1350 = vadd.f32 0.0, %v1349
    %1351 = vdwg.mxu0
    %v1353 = vsel %vm24, %v35, 0
    %v1356 = vsel %vm24, %v36, 0
    %v1359 = vsel %vm24, %v37, 0
    %v1362 = vsel %vm24, %v38, 0
    %v1365 = vsel %vm24, %v39, 0
    %v1368 = vsel %vm24, %v40, 0
    %1370 = vmatpush.msra.mxu0 0.0
    %1371 = vmatpush.msra.mxu0 0.0
    %1372 = vmatpush.msra.mxu0 0.0
    %1373 = vmatpush.msra.mxu0 0.0
    %1374 = vmatpush.msra.mxu0 0.0
    %1375 = vmatpush.msra.mxu0 0.0
    %1376 = vmatpush.msra.mxu0 0.0
    %1377 = vmatpush.msra.mxu0 0.0
    %1378 = vmatpush.msra.mxu0 0.0
    %1379 = vmatpush.msra.mxu0 0.0
    %1380 = vmatpush.msra.mxu0 0.0
    %1381 = vmatpush.msra.mxu0 0.0
    %1382 = vmatpush.msra.mxu0 %v1294
    %1383 = vmatpush.msra.mxu0 %v1293
    %1384 = vmatpush.msra.mxu0 %v1292
    %1385 = vmatpush.msra.mxu0 %v1291
    %1386 = vmatmul.f32.gmra.mxu0 %v1353
    %v1387 = vpop.f32.mrf.mxu0
    %v1388 = vadd.f32 %v1335, %v1387
    %1389 = vmatmul.f32.gmra.mxu0 %v1356
    %v1390 = vpop.f32.mrf.mxu0
    %v1391 = vadd.f32 %v1338, %v1390
    %1392 = vmatmul.f32.gmra.mxu0 %v1359
    %v1393 = vpop.f32.mrf.mxu0
    %v1394 = vadd.f32 %v1341, %v1393
    %1395 = vmatmul.f32.gmra.mxu0 %v1362
    %v1396 = vpop.f32.mrf.mxu0
    %v1397 = vadd.f32 %v1344, %v1396
    %1398 = vmatmul.f32.gmra.mxu0 %v1365
    %v1399 = vpop.f32.mrf.mxu0
    %v1400 = vadd.f32 %v1347, %v1399
    %1401 = vmatmul.f32.gmra.mxu0 %v1368
    %v1402 = vpop.f32.mrf.mxu0
    %v1403 = vadd.f32 %v1350, %v1402
    %1404 = vdwg.mxu0
    %v1405 = vld [vmem:[%s5 + $0xa] sm:$0x1]
    %v1406 = vperm.slane %v1405, 0
    %v1407 = vadd.f32 %v1388, %v1406
    %v1408 = vadd.f32 %v1391, %v1406
    %v1409 = vadd.f32 %v1394, %v1406
    %v1410 = vadd.f32 %v1397, %v1406
    %v1411 = vadd.f32 %v1400, %v1406
    %v1412 = vadd.f32 %v1403, %v1406
    %v1413 = vmul.f32 %v1407, 0.5
    %v1414 = vmul.f32 %v1408, 0.5
    %v1415 = vmul.f32 %v1409, 0.5
    %v1416 = vmul.f32 %v1410, 0.5
    %v1417 = vmul.f32 %v1411, 0.5
    %v1418 = vmul.f32 %v1412, 0.5
    %v1419 = vtanh.pop %v1413
    %v1420 = vtanh.pop %v1414
    %v1421 = vtanh.pop %v1415
    %v1422 = vtanh.pop %v1416
    %v1423 = vtanh.pop %v1417
    %v1424 = vtanh.pop %v1418
    %v1425 = vadd.f32 %v1419, 1.0
    %v1426 = vadd.f32 %v1420, 1.0
    %v1427 = vadd.f32 %v1421, 1.0
    %v1428 = vadd.f32 %v1422, 1.0
    %v1429 = vadd.f32 %v1423, 1.0
    %v1430 = vadd.f32 %v1424, 1.0
    %v1431 = vmul.f32 %v1425, 0.5
    %v1432 = vmul.f32 %v1426, 0.5
    %v1433 = vmul.f32 %v1427, 0.5
    %v1434 = vmul.f32 %v1428, 0.5
    %v1435 = vmul.f32 %v1429, 0.5
    %v1436 = vmul.f32 %v1430, 0.5
    %v1437 = vmul.f32 %v1407, %v1431
    %v1438 = vmul.f32 %v1408, %v1432
    %v1439 = vmul.f32 %v1409, %v1433
    %v1440 = vmul.f32 %v1410, %v1434
    %v1441 = vmul.f32 %v1411, %v1435
    %v1442 = vmul.f32 %v1412, %v1436
    %v1443 = vld [vmem:[%s4 + $0x128] sm:$0xff]
    %v1444 = vld [vmem:[%s4 + $0x130] sm:$0xff]
    %v1445 = vld [vmem:[%s4 + $0x138] sm:$0xff]
    %v1446 = vld [vmem:[%s4 + $0x140] sm:$0xff]
    %v1447 = vld [vmem:[%s5 + $0xb] sm:$0x1]
    %v1448 = vperm.slane %v1447, 0
    %v1450 = vsel %vm24, %v1437, 0
    %v1453 = vsel %vm24, %v1438, 0
    %v1456 = vsel %vm24, %v1439, 0
    %v1459 = vsel %vm24, %v1440, 0
    %v1462 = vsel %vm24, %v1441, 0
    %v1465 = vsel %vm24, %v1442, 0
    %1467 = vmatpush.msra.mxu0 0.0
    %1468 = vmatpush.msra.mxu0 0.0
    %1469 = vmatpush.msra.mxu0 0.0
    %1470 = vmatpush.msra.mxu0 0.0
    %1471 = vmatpush.msra.mxu0 0.0
    %1472 = vmatpush.msra.mxu0 0.0
    %1473 = vmatpush.msra.mxu0 0.0
    %1474 = vmatpush.msra.mxu0 0.0
    %1475 = vmatpush.msra.mxu0 0.0
    %1476 = vmatpush.msra.mxu0 0.0
    %1477 = vmatpush.msra.mxu0 0.0
    %1478 = vmatpush.msra.mxu0 0.0
    %1479 = vmatpush.msra.mxu0 %v1446
    %1480 = vmatpush.msra.mxu0 %v1445
    %1481 = vmatpush.msra.mxu0 %v1444
    %1482 = vmatpush.msra.mxu0 %v1443
    %1483 = vmatmul.f32.gmra.mxu0 %v1450
    %v1484 = vpop.f32.mrf.mxu0
    %v1485 = vadd.f32 %v1448, %v1484
    %1486 = vmatmul.f32.gmra.mxu0 %v1453
    %v1487 = vpop.f32.mrf.mxu0
    %v1488 = vadd.f32 %v1448, %v1487
    %1489 = vmatmul.f32.gmra.mxu0 %v1456
    %v1490 = vpop.f32.mrf.mxu0
    %v1491 = vadd.f32 %v1448, %v1490
    %1492 = vmatmul.f32.gmra.mxu0 %v1459
    %v1493 = vpop.f32.mrf.mxu0
    %v1494 = vadd.f32 %v1448, %v1493
    %1495 = vmatmul.f32.gmra.mxu0 %v1462
    %v1496 = vpop.f32.mrf.mxu0
    %v1497 = vadd.f32 %v1448, %v1496
    %1498 = vmatmul.f32.gmra.mxu0 %v1465
    %v1499 = vpop.f32.mrf.mxu0
    %v1500 = vadd.f32 %v1448, %v1499
    %1501 = vdwg.mxu0
    %v1502 = vmul.f32 %v1485, 0.5
    %v1503 = vmul.f32 %v1488, 0.5
    %v1504 = vmul.f32 %v1491, 0.5
    %v1505 = vmul.f32 %v1494, 0.5
    %v1506 = vmul.f32 %v1497, 0.5
    %v1507 = vmul.f32 %v1500, 0.5
    %v1508 = vtanh.pop %v1502
    %v1509 = vtanh.pop %v1503
    %v1510 = vtanh.pop %v1504
    %v1511 = vtanh.pop %v1505
    %v1512 = vtanh.pop %v1506
    %v1513 = vtanh.pop %v1507
    %v1514 = vadd.f32 %v1508, 1.0
    %v1515 = vadd.f32 %v1509, 1.0
    %v1516 = vadd.f32 %v1510, 1.0
    %v1517 = vadd.f32 %v1511, 1.0
    %v1518 = vadd.f32 %v1512, 1.0
    %v1519 = vadd.f32 %v1513, 1.0
    %v1520 = vmul.f32 %v1514, 0.5
    %v1521 = vmul.f32 %v1515, 0.5
    %v1522 = vmul.f32 %v1516, 0.5
    %v1523 = vmul.f32 %v1517, 0.5
    %v1524 = vmul.f32 %v1518, 0.5
    %v1525 = vmul.f32 %v1519, 0.5
    %v1526 = vmul.f32 %v1485, %v1520
    %v1527 = vmul.f32 %v1488, %v1521
    %v1528 = vmul.f32 %v1491, %v1522
    %v1529 = vmul.f32 %v1494, %v1523
    %v1530 = vmul.f32 %v1497, %v1524
    %v1531 = vmul.f32 %v1500, %v1525
    %v1532 = vld [vmem:[%s4 + $0x148] sm:$0xff]
    %v1533 = vld [vmem:[%s4 + $0x150] sm:$0xff]
    %v1534 = vld [vmem:[%s4 + $0x158] sm:$0xff]
    %v1535 = vld [vmem:[%s4 + $0x160] sm:$0xff]
    %v1536 = vld [vmem:[%s5 + $0xc] sm:$0x1]
    %v1537 = vperm.slane %v1536, 0
    %v1539 = vsel %vm24, %v1526, 0
    %v1542 = vsel %vm24, %v1527, 0
    %v1545 = vsel %vm24, %v1528, 0
    %v1548 = vsel %vm24, %v1529, 0
    %v1551 = vsel %vm24, %v1530, 0
    %v1554 = vsel %vm24, %v1531, 0
    %1556 = vmatpush.msra.mxu0 0.0
    %1557 = vmatpush.msra.mxu0 0.0
    %1558 = vmatpush.msra.mxu0 0.0
    %1559 = vmatpush.msra.mxu0 0.0
    %1560 = vmatpush.msra.mxu0 0.0
    %1561 = vmatpush.msra.mxu0 0.0
    %1562 = vmatpush.msra.mxu0 0.0
    %1563 = vmatpush.msra.mxu0 0.0
    %1564 = vmatpush.msra.mxu0 0.0
    %1565 = vmatpush.msra.mxu0 0.0
    %1566 = vmatpush.msra.mxu0 0.0
    %1567 = vmatpush.msra.mxu0 0.0
    %1568 = vmatpush.msra.mxu0 %v1535
    %1569 = vmatpush.msra.mxu0 %v1534
    %1570 = vmatpush.msra.mxu0 %v1533
    %1571 = vmatpush.msra.mxu0 %v1532
    %1572 = vmatmul.f32.gmra.mxu0 %v1539
    %v1573 = vpop.f32.mrf.mxu0
    %1574 = vmatmul.f32.gmra.mxu0 %v1542
    %v1575 = vpop.f32.mrf.mxu0
    %v1576 = vadd.f32 %v1537, %v1575
    %1577 = vmatmul.f32.gmra.mxu0 %v1545
    %v1578 = vpop.f32.mrf.mxu0
    %v1579 = vadd.f32 %v1537, %v1578
    %1580 = vmatmul.f32.gmra.mxu0 %v1548
    %v1581 = vpop.f32.mrf.mxu0
    %1582 = vmatmul.f32.gmra.mxu0 %v1551
    %v1583 = vpop.f32.mrf.mxu0
    %v1584 = vadd.f32 %v1537, %v1583
    %1585 = vmatmul.f32.gmra.mxu0 %v1554
    %v1586 = vpop.f32.mrf.mxu0
    %v1587 = vadd.f32 %v1537, %v1586
    %1588 = vdwg.mxu0
    %v1589 = vld [vmem:[%s5 + $0xd] sm:$0x1]
    %v1590 = vld [vmem:[%s5 + $0xe] sm:$0x1]
    %v1591 = vsel %vm24, %v1576, 0.0
    %1592 = vadd.xlane.f32.xlu0 %v1591
    %v1593 = vpop.xlane.xlu0 %1592
    %v1594 = vsel %vm24, %v1579, 0.0
    %1595 = vadd.xlane.f32.xlu0 %v1594
    %v1596 = vpop.xlane.xlu0 %1595
    %v1597 = vsel %vm24, %v1584, 0.0
    %1598 = vadd.xlane.f32.xlu0 %v1597
    %v1599 = vpop.xlane.xlu0 %1598
    %v1600 = vsel %vm24, %v1587, 0.0
    %1601 = vadd.xlane.f32.xlu0 %v1600
    %v1602 = vpop.xlane.xlu0 %1601
    %v1603 = vmul.f32 %v1593, %v244
    %v1604 = vmul.f32 %v1596, %v244
    %v1605 = vmul.f32 %v1599, %v244
    %v1606 = vmul.f32 %v1602, %v244
    %v1607 = vmul.f32 %v1576, %v1576
    %v1608 = vmul.f32 %v1579, %v1579
    %v1609 = vmul.f32 %v1584, %v1584
    %v1610 = vmul.f32 %v1587, %v1587
    %v1611 = vsel %vm24, %v1607, 0.0
    %1612 = vadd.xlane.f32.xlu0 %v1611
    %v1613 = vpop.xlane.xlu0 %1612
    %v1614 = vsel %vm24, %v1608, 0.0
    %1615 = vadd.xlane.f32.xlu0 %v1614
    %v1616 = vpop.xlane.xlu0 %1615
    %v1617 = vsel %vm24, %v1609, 0.0
    %1618 = vadd.xlane.f32.xlu0 %v1617
    %v1619 = vpop.xlane.xlu0 %1618
    %v1620 = vsel %vm24, %v1610, 0.0
    %1621 = vadd.xlane.f32.xlu0 %v1620
    %v1622 = vpop.xlane.xlu0 %1621
    %v1623 = vmul.f32 %v1613, %v244
    %v1624 = vmul.f32 %v1616, %v244
    %v1625 = vmul.f32 %v1619, %v244
    %v1626 = vmul.f32 %v1622, %v244
    %v1627 = vmul.f32 %v1603, %v1603
    %v1628 = vmul.f32 %v1604, %v1604
    %v1629 = vmul.f32 %v1605, %v1605
    %v1630 = vmul.f32 %v1606, %v1606
    %v1631 = vsub.f32 %v1623, %v1627
    %v1632 = vsub.f32 %v1624, %v1628
    %v1633 = vsub.f32 %v1625, %v1629
    %v1634 = vsub.f32 %v1626, %v1630
    %v1635 = vsub.f32 %v1576, %v1603
    %v1636 = vsub.f32 %v1579, %v1604
    %v1637 = vsub.f32 %v1584, %v1605
    %v1638 = vsub.f32 %v1587, %v1606
    %v1639 = vadd.f32 %v1631, 1e-05
    %v1640 = vadd.f32 %v1632, 1e-05
    %v1641 = vadd.f32 %v1633, 1e-05
    %v1642 = vadd.f32 %v1634, 1e-05
    %v1643 = vrsqrt.pop %v1639
    %v1644 = vmul.f32 %v1643, %v1639
    %v1645 = vmul.f32 %v1644, %v1643
    %v1646 = vmul.f32 0.5, %v1645
    %v1647 = vsub.f32 1.5, %v1646
    %v1648 = vmul.f32 %v1643, %v1647
    %vm1649 = vweird.f32 %v1639
    %vm1650 = vweird.f32 %v1643
    %vm1651 = vmor %vm1649, %vm1650
    %v1652 = vsel %vm1651, %v1643, %v1648
    %v1653 = vrsqrt.pop %v1640
    %v1654 = vmul.f32 %v1653, %v1640
    %v1655 = vmul.f32 %v1654, %v1653
    %v1656 = vmul.f32 0.5, %v1655
    %v1657 = vsub.f32 1.5, %v1656
    %v1658 = vmul.f32 %v1653, %v1657
    %vm1659 = vweird.f32 %v1640
    %vm1660 = vweird.f32 %v1653
    %vm1661 = vmor %vm1659, %vm1660
    %v1662 = vsel %vm1661, %v1653, %v1658
    %v1663 = vrsqrt.pop %v1641
    %v1664 = vmul.f32 %v1663, %v1641
    %v1665 = vmul.f32 %v1664, %v1663
    %v1666 = vmul.f32 0.5, %v1665
    %v1667 = vsub.f32 1.5, %v1666
    %v1668 = vmul.f32 %v1663, %v1667
    %vm1669 = vweird.f32 %v1641
    %vm1670 = vweird.f32 %v1663
    %vm1671 = vmor %vm1669, %vm1670
    %v1672 = vsel %vm1671, %v1663, %v1668
    %v1673 = vrsqrt.pop %v1642
    %v1674 = vmul.f32 %v1673, %v1642
    %v1675 = vmul.f32 %v1674, %v1673
    %v1676 = vmul.f32 0.5, %v1675
    %v1677 = vsub.f32 1.5, %v1676
    %v1678 = vmul.f32 %v1673, %v1677
    %vm1679 = vweird.f32 %v1642
    %vm1680 = vweird.f32 %v1673
    %vm1681 = vmor %vm1679, %vm1680
    %v1682 = vsel %vm1681, %v1673, %v1678
    %v1683 = vmul.f32 %v1635, %v1652
    %v1684 = vmul.f32 %v1636, %v1662
    %v1685 = vmul.f32 %v1637, %v1672
    %v1686 = vmul.f32 %v1638, %v1682
    %v1687 = vperm.slane %v1589, 0
    %v1688 = vmul.f32 %v1683, %v1687
    %v1689 = vmul.f32 %v1684, %v1687
    %v1690 = vmul.f32 %v1685, %v1687
    %v1691 = vmul.f32 %v1686, %v1687
    %v1692 = vperm.slane %v1590, 0
    %v1693 = vadd.f32 %v1688, %v1692
    %v1694 = vadd.f32 %v1689, %v1692
    %v1695 = vadd.f32 %v1690, %v1692
    %v1696 = vadd.f32 %v1691, %v1692
    %v1697 = vadd.f32 %v1693, %v36
    %v1698 = vadd.f32 %v1694, %v37
    %v1699 = vadd.f32 %v1695, %v39
    %v1700 = vadd.f32 %v1696, %v40
    %v1701 = vld [vmem:[%s4 + $0x168] sm:$0xff]
    %v1702 = vld [vmem:[%s4 + $0x170] sm:$0xff]
    %v1703 = vld [vmem:[%s4 + $0x178] sm:$0xff]
    %v1704 = vld [vmem:[%s4 + $0x180] sm:$0xff]
    %v1705 = vld [vmem:[%s5 + $0xf] sm:$0x1]
    %v1706 = vperm.slane %v1705, 0
    %v1708 = vsel %vm24, %v1697, 0
    %v1711 = vsel %vm24, %v1698, 0
    %v1714 = vsel %vm24, %v1699, 0
    %v1717 = vsel %vm24, %v1700, 0
    %1719 = vmatpush.msra.mxu0 0.0
    %1720 = vmatpush.msra.mxu0 0.0
    %1721 = vmatpush.msra.mxu0 0.0
    %1722 = vmatpush.msra.mxu0 0.0
    %1723 = vmatpush.msra.mxu0 0.0
    %1724 = vmatpush.msra.mxu0 0.0
    %1725 = vmatpush.msra.mxu0 0.0
    %1726 = vmatpush.msra.mxu0 0.0
    %1727 = vmatpush.msra.mxu0 0.0
    %1728 = vmatpush.msra.mxu0 0.0
    %1729 = vmatpush.msra.mxu0 0.0
    %1730 = vmatpush.msra.mxu0 0.0
    %1731 = vmatpush.msra.mxu0 %v1704
    %1732 = vmatpush.msra.mxu0 %v1703
    %1733 = vmatpush.msra.mxu0 %v1702
    %1734 = vmatpush.msra.mxu0 %v1701
    %1735 = vmatmul.f32.gmra.mxu0 %v1708
    %v1736 = vpop.f32.mrf.mxu0
    %v1737 = vadd.f32 %v1706, %v1736
    %1738 = vmatmul.f32.gmra.mxu0 %v1711
    %v1739 = vpop.f32.mrf.mxu0
    %v1740 = vadd.f32 %v1706, %v1739
    %1741 = vmatmul.f32.gmra.mxu0 %v1714
    %v1742 = vpop.f32.mrf.mxu0
    %v1743 = vadd.f32 %v1706, %v1742
    %1744 = vmatmul.f32.gmra.mxu0 %v1717
    %v1745 = vpop.f32.mrf.mxu0
    %v1746 = vadd.f32 %v1706, %v1745
    %1747 = vdwg.mxu0
    %v1748 = vmul.f32 %v1737, 0.5
    %v1749 = vmul.f32 %v1740, 0.5
    %v1750 = vmul.f32 %v1743, 0.5
    %v1751 = vmul.f32 %v1746, 0.5
    %v1752 = vtanh.pop %v1748
    %v1753 = vtanh.pop %v1749
    %v1754 = vtanh.pop %v1750
    %v1755 = vtanh.pop %v1751
    %v1756 = vadd.f32 %v1752, 1.0
    %v1757 = vadd.f32 %v1753, 1.0
    %v1758 = vadd.f32 %v1754, 1.0
    %v1759 = vadd.f32 %v1755, 1.0
    %v1760 = vmul.f32 %v1756, 0.5
    %v1761 = vmul.f32 %v1757, 0.5
    %v1762 = vmul.f32 %v1758, 0.5
    %v1763 = vmul.f32 %v1759, 0.5
    %v1764 = vmul.f32 %v1737, %v1760
    %v1765 = vmul.f32 %v1740, %v1761
    %v1766 = vmul.f32 %v1743, %v1762
    %v1767 = vmul.f32 %v1746, %v1763
    %v1768 = vld [vmem:[%s4 + $0x188] sm:$0xff]
    %v1769 = vld [vmem:[%s4 + $0x190] sm:$0xff]
    %v1770 = vld [vmem:[%s4 + $0x198] sm:$0xff]
    %v1771 = vld [vmem:[%s4 + $0x1a0] sm:$0xff]
    %v1772 = vld [vmem:[%s5 + $0x10] sm:$0x1]
    %v1773 = vperm.slane %v1772, 0
    %v1775 = vsel %vm24, %v1764, 0
    %v1778 = vsel %vm24, %v1765, 0
    %v1781 = vsel %vm24, %v1766, 0
    %v1784 = vsel %vm24, %v1767, 0
    %1786 = vmatpush.msra.mxu0 0.0
    %1787 = vmatpush.msra.mxu0 0.0
    %1788 = vmatpush.msra.mxu0 0.0
    %1789 = vmatpush.msra.mxu0 0.0
    %1790 = vmatpush.msra.mxu0 0.0
    %1791 = vmatpush.msra.mxu0 0.0
    %1792 = vmatpush.msra.mxu0 0.0
    %1793 = vmatpush.msra.mxu0 0.0
    %1794 = vmatpush.msra.mxu0 0.0
    %1795 = vmatpush.msra.mxu0 0.0
    %1796 = vmatpush.msra.mxu0 0.0
    %1797 = vmatpush.msra.mxu0 0.0
    %1798 = vmatpush.msra.mxu0 %v1771
    %1799 = vmatpush.msra.mxu0 %v1770
    %1800 = vmatpush.msra.mxu0 %v1769
    %1801 = vmatpush.msra.mxu0 %v1768
    %1802 = vmatmul.f32.gmra.mxu0 %v1775
    %v1803 = vpop.f32.mrf.mxu0
    %v1804 = vadd.f32 %v1773, %v1803
    %1805 = vmatmul.f32.gmra.mxu0 %v1778
    %v1806 = vpop.f32.mrf.mxu0
    %v1807 = vadd.f32 %v1773, %v1806
    %1808 = vmatmul.f32.gmra.mxu0 %v1781
    %v1809 = vpop.f32.mrf.mxu0
    %v1810 = vadd.f32 %v1773, %v1809
    %1811 = vmatmul.f32.gmra.mxu0 %v1784
    %v1812 = vpop.f32.mrf.mxu0
    %v1813 = vadd.f32 %v1773, %v1812
    %1814 = vdwg.mxu0
    %v1815 = vmul.f32 %v1804, 0.5
    %v1816 = vmul.f32 %v1807, 0.5
    %v1817 = vmul.f32 %v1810, 0.5
    %v1818 = vmul.f32 %v1813, 0.5
    %v1819 = vtanh.pop %v1815
    %v1820 = vtanh.pop %v1816
    %v1821 = vtanh.pop %v1817
    %v1822 = vtanh.pop %v1818
    %v1823 = vadd.f32 %v1819, 1.0
    %v1824 = vadd.f32 %v1820, 1.0
    %v1825 = vadd.f32 %v1821, 1.0
    %v1826 = vadd.f32 %v1822, 1.0
    %v1827 = vmul.f32 %v1823, 0.5
    %v1828 = vmul.f32 %v1824, 0.5
    %v1829 = vmul.f32 %v1825, 0.5
    %v1830 = vmul.f32 %v1826, 0.5
    %v1831 = vmul.f32 %v1804, %v1827
    %v1832 = vmul.f32 %v1807, %v1828
    %v1833 = vmul.f32 %v1810, %v1829
    %v1834 = vmul.f32 %v1813, %v1830
    %v1835 = vld [vmem:[%s4 + $0x1a8] sm:$0xff]
    %v1836 = vld [vmem:[%s4 + $0x1b0] sm:$0xff]
    %v1837 = vld [vmem:[%s4 + $0x1b8] sm:$0xff]
    %v1838 = vld [vmem:[%s4 + $0x1c0] sm:$0xff]
    %v1839 = vld [vmem:[%s5 + $0x11] sm:$0x1]
    %v1840 = vperm.slane %v1839, 0
    %v1842 = vsel %vm24, %v1831, 0
    %v1845 = vsel %vm24, %v1832, 0
    %v1848 = vsel %vm24, %v1833, 0
    %v1851 = vsel %vm24, %v1834, 0
    %1853 = vmatpush.msra.mxu0 0.0
    %1854 = vmatpush.msra.mxu0 0.0
    %1855 = vmatpush.msra.mxu0 0.0
    %1856 = vmatpush.msra.mxu0 0.0
    %1857 = vmatpush.msra.mxu0 0.0
    %1858 = vmatpush.msra.mxu0 0.0
    %1859 = vmatpush.msra.mxu0 0.0
    %1860 = vmatpush.msra.mxu0 0.0
    %1861 = vmatpush.msra.mxu0 0.0
    %1862 = vmatpush.msra.mxu0 0.0
    %1863 = vmatpush.msra.mxu0 0.0
    %1864 = vmatpush.msra.mxu0 0.0
    %1865 = vmatpush.msra.mxu0 %v1838
    %1866 = vmatpush.msra.mxu0 %v1837
    %1867 = vmatpush.msra.mxu0 %v1836
    %1868 = vmatpush.msra.mxu0 %v1835
    %1869 = vmatmul.f32.gmra.mxu0 %v1842
    %v1870 = vpop.f32.mrf.mxu0
    %v1871 = vadd.f32 %v1840, %v1870
    %1872 = vmatmul.f32.gmra.mxu0 %v1845
    %v1873 = vpop.f32.mrf.mxu0
    %v1874 = vadd.f32 %v1840, %v1873
    %1875 = vmatmul.f32.gmra.mxu0 %v1848
    %v1876 = vpop.f32.mrf.mxu0
    %v1877 = vadd.f32 %v1840, %v1876
    %1878 = vmatmul.f32.gmra.mxu0 %v1851
    %v1879 = vpop.f32.mrf.mxu0
    %v1880 = vadd.f32 %v1840, %v1879
    %1881 = vdwg.mxu0
    %vm1882 = vcmask 130048
    %1883 = vst.msk [vmem:[#allocation3] sm:$0xff] %vm1882, %v1871
    %1884 = vst.msk [vmem:[#allocation3 + $0x8] sm:$0xff] %vm1882, %v1874
    %1885 = vst.msk [vmem:[#allocation3 + $0x10] sm:$0xff] %vm1882, %v1877
    %1886 = vst.msk [vmem:[#allocation3 + $0x18] sm:$0xff] %vm1882, %v1880
    // Predicated region
    $region26: #{assimilator_decoder_forward.1} parent=1 // pred_check
      _
    $region27: #{assimilator_decoder_forward.1} parent=1 // pred_check_branch
      %1888 = sbr.rel (0) target = $region29
    $region28: #{assimilator_decoder_forward.1} parent=1 // pred_region
      %1890 = vsyncadd [#allocation4], 0
      %s1891 = sshll.u32 [#allocation3], 4
      %s1892 = int_to_ptr.vmem [resolvable:$true] %s1891
      %s1893 = sshll.u32 %s6, 4
      %s1894 = int_to_ptr.hbm [resolvable:$true] %s1893
      %1899 = dma.vmem_to_hbm [thread:$0]  %s1892, 512, %s1894, [#allocation4], 128, 128, 8
    $region29: #{assimilator_decoder_forward.1} parent=1 // pred_fallthru
      _
    // Predicated region
    $region30: #{assimilator_decoder_forward.1} parent=1 // pred_check
      _
    $region31: #{assimilator_decoder_forward.1} parent=1 // pred_check_branch
      %1901 = sbr.rel (0) target = $region33
    $region32: #{assimilator_decoder_forward.1} parent=1 // pred_region
      %1903 = dma.done [#allocation4], 512
    $region33: #{assimilator_decoder_forward.1} parent=1 // pred_fallthru
      _
    %1904 = vsyncpa [#allocation4], 1

</llo_original>
